<compile_context>
chip_gen: v7x
topology: tpu7x:2x2x1
jax: 0.10.0
libtpu: 0.0.40
codegen_flags: <defaults>
</compile_context>

<pallas_src>
import functools

import jax
import jax.numpy as jnp
from jax.experimental import pallas as pl
from jax.experimental.pallas import tpu as pltpu


def _round_up(x, m):
    return ((x + m - 1) // m) * m


@functools.lru_cache(maxsize=None)
def _make_actor_kernel(batch, state_dim, rand_dim, with_rand):
    """Build the kernel body. with_rand=False is the 'Std' fast path."""

    def kernel(*refs):
        if with_rand:
            (rng_ref, state_ref, rand_ref,
             w1_ref, b1_ref, w2_ref, b2_ref,
             w3a_ref, w3b_ref, b3_ref, w4_ref, b4_ref,
             out_ref, x_scr, r_scr) = refs
        else:
            (rng_ref, state_ref,
             w1_ref, b1_ref, w2_ref, b2_ref,
             w3a_ref, b3_ref, w4_ref, b4_ref,
             out_ref, x_scr) = refs

        # Pad + cast the raw state inside the kernel (zero-init scratch, then a
        # masked partial store of the real rows/cols). Padded rows/cols are zero
        # so they contribute nothing through the zero-padded weight rows.
        x_scr[...] = jnp.zeros_like(x_scr)
        x_scr[:batch, :state_dim] = state_ref[...]
        x = x_scr[...].astype(jnp.bfloat16)                       # (Bp, sd_p)

        # state_encoder: Linear -> ReLU -> Linear -> ReLU   (f32 accumulate)
        h1 = jnp.dot(x, w1_ref[...], preferred_element_type=jnp.float32) + b1_ref[...]
        h1 = jnp.maximum(h1, 0.0).astype(jnp.bfloat16)
        h2 = jnp.dot(h1, w2_ref[...], preferred_element_type=jnp.float32) + b2_ref[...]
        h2 = jnp.maximum(h2, 0.0).astype(jnp.bfloat16)

        # randomness_encoder: Linear(cat(feat, rand)) -> Sigmoid -> Linear -> Sigmoid
        z3 = jnp.dot(h2, w3a_ref[...], preferred_element_type=jnp.float32) + b3_ref[...]
        if with_rand:
            r_scr[...] = jnp.zeros_like(r_scr)
            r_scr[:batch, :rand_dim] = rand_ref[...]
            r = r_scr[...].astype(jnp.bfloat16)
            z3 = z3 + jnp.dot(r, w3b_ref[...], preferred_element_type=jnp.float32)
        h3 = jax.nn.sigmoid(z3).astype(jnp.bfloat16)
        z4 = jnp.dot(h3, w4_ref[...], preferred_element_type=jnp.float32) + b4_ref[...]
        a = jax.nn.sigmoid(z4)

        # scale into action range; range comes from SMEM so it never retraces.
        lo = rng_ref[0]
        hi = rng_ref[1]
        out_ref[...] = a * (hi - lo) + lo

    return kernel


def init_params(key, state_dim, action_dim, rand_var_dim=16):
    """Deterministic synthetic parameters (PyTorch-default-style uniform fan-in init),
    zero-padded and stored bf16 (biases stay f32).

    Lane (output/column) dims pad to multiples of 128; contraction row dims pad
    only to 16 (bf16 sublane pair) per the perf review."""
    H1, H2, H3 = 400, 300, 100
    sd_p = _round_up(state_dim, 16)       # rows of w1   (8  -> 16)
    rd_p = _round_up(rand_var_dim, 16)    # rows of w3b  (16 -> 16)
    h1_p = _round_up(H1, 128)             # 512
    h2_p = _round_up(H2, 128)             # 384
    h3_p = _round_up(H3, 128)             # 128
    ad_p = _round_up(action_dim, 128)     # 128

    k1, k2, k3, k4 = jax.random.split(key, 4)

    def make_layer(k, fin, fout, fin_p, fout_p):
        kw, kb = jax.random.split(k)
        bound = float(fin) ** -0.5
        w = jax.random.uniform(kw, (fin, fout), jnp.float32, -bound, bound)
        b = jax.random.uniform(kb, (1, fout), jnp.float32, -bound, bound)
        wp = jnp.zeros((fin_p, fout_p), jnp.float32).at[:fin, :fout].set(w)
        bp = jnp.zeros((1, fout_p), jnp.float32).at[:, :fout].set(b)
        return wp.astype(jnp.bfloat16), bp

    w1, b1 = make_layer(k1, state_dim, H1, sd_p, h1_p)
    w2, b2 = make_layer(k2, H1, H2, h1_p, h2_p)

    # Layer 3 takes concat(feature[300], rand[16]) -> split weight into w3a / w3b.
    fin3 = H2 + rand_var_dim
    bound3 = float(fin3) ** -0.5
    kw3, kb3 = jax.random.split(k3)
    w3 = jax.random.uniform(kw3, (fin3, H3), jnp.float32, -bound3, bound3)
    b3 = jax.random.uniform(kb3, (1, H3), jnp.float32, -bound3, bound3)
    w3a = jnp.zeros((h2_p, h3_p), jnp.float32).at[:H2, :H3].set(w3[:H2]).astype(jnp.bfloat16)
    w3b = jnp.zeros((rd_p, h3_p), jnp.float32).at[:rand_var_dim, :H3].set(w3[H2:]).astype(jnp.bfloat16)
    b3p = jnp.zeros((1, h3_p), jnp.float32).at[:, :H3].set(b3)

    # W4 padded rows are zero so sigmoid(0)=0.5 on padded h3 lanes contributes nothing.
    w4, b4 = make_layer(k4, H3, action_dim, h3_p, ad_p)

    return dict(w1=w1, b1=b1, w2=w2, b2=b2, w3a=w3a, w3b=w3b, b3=b3p, w4=w4, b4=b4,
                state_dim=state_dim, action_dim=action_dim, rand_var_dim=rand_var_dim,
                sd_p=sd_p, rd_p=rd_p, ad_p=ad_p)


def actor_forward(state, params, action_range, rand_var=None):
    """Run the Actor forward pass in a single un-gridded Pallas kernel.

    rand_var=None -> 'Std' mode (zeros; fast path skips the rand dot entirely).
    rand_var given -> 'Ent' mode (caller supplies the N(0,1) sample).
    """
    if state.ndim == 1:                      # matches torch unsqueeze(0)
        state = state[None, :]
    state = state.astype(jnp.float32)
    B, sd = state.shape

    sd_p, rd_p, ad_p = params["sd_p"], params["rd_p"], params["ad_p"]
    action_dim = params["action_dim"]
    h1_p = params["w1"].shape[1]
    h2_p = params["w2"].shape[1]
    h3_p = params["w3a"].shape[1]

    # bf16 vregs pack [16,128]: pad the batch to 16 so intermediates fill whole
    # packed vregs (padding happens only inside the kernel scratch, not here).
    Bp = _round_up(max(B, 16), 16)

    rng = jnp.asarray(action_range, dtype=jnp.float32).reshape(2)

    vmem = pltpu.MemorySpace.VMEM
    smem = pltpu.MemorySpace.SMEM

    if rand_var is None:
        kernel = _make_actor_kernel(B, sd, params["rand_var_dim"], False)
        inputs = (rng, state,
                  params["w1"], params["b1"], params["w2"], params["b2"],
                  params["w3a"], params["b3"], params["w4"], params["b4"])
        scratch = [pltpu.VMEM((Bp, sd_p), jnp.float32)]
        rand_flops = 0
    else:
        if rand_var.ndim == 1:
            rand_var = rand_var[None, :]
        rand_var = rand_var.astype(jnp.float32)
        kernel = _make_actor_kernel(B, sd, rand_var.shape[1], True)
        inputs = (rng, state, rand_var,
                  params["w1"], params["b1"], params["w2"], params["b2"],
                  params["w3a"], params["w3b"], params["b3"], params["w4"], params["b4"])
        scratch = [pltpu.VMEM((Bp, sd_p), jnp.float32),
                   pltpu.VMEM((Bp, rd_p), jnp.float32)]
        rand_flops = 2 * Bp * rd_p * h3_p

    in_specs = ([pl.BlockSpec(memory_space=smem)]
                + [pl.BlockSpec(memory_space=vmem) for _ in inputs[1:]])

    flops = 2 * Bp * (sd_p * h1_p + h1_p * h2_p + h2_p * h3_p + h3_p * ad_p) + rand_flops
    transcendentals = Bp * (h3_p + ad_p)                       # sigmoids
    bytes_accessed = (sum(int(a.size) * a.dtype.itemsize for a in inputs)
                      + Bp * ad_p * 4)

    out = pl.pallas_call(
        kernel,
        out_shape=jax.ShapeDtypeStruct((Bp, ad_p), jnp.float32),
        in_specs=in_specs,
        out_specs=pl.BlockSpec(memory_space=vmem),
        scratch_shapes=scratch,
        cost_estimate=pl.CostEstimate(flops=flops,
                                      transcendentals=transcendentals,
                                      bytes_accessed=bytes_accessed),
    )(*inputs)

    return out[:B, :action_dim]


def actor_forward_ref(state, params, action_range, rand_var=None):
    """Pure-JAX reference (same padded bf16 weights, bf16 matmul inputs, f32 accumulate)."""
    if state.ndim == 1:
        state = state[None, :]
    B = state.shape[0]

    def bdot(a, w):
        return jnp.dot(a.astype(jnp.bfloat16), w, preferred_element_type=jnp.float32)

    x = jnp.zeros((B, params["sd_p"]), jnp.float32).at[:, :state.shape[1]].set(state)
    h1 = jnp.maximum(bdot(x, params["w1"]) + params["b1"], 0.0)
    h2 = jnp.maximum(bdot(h1, params["w2"]) + params["b2"], 0.0)
    z3 = bdot(h2, params["w3a"]) + params["b3"]
    if rand_var is not None:
        if rand_var.ndim == 1:
            rand_var = rand_var[None, :]
        r = jnp.zeros((B, params["rd_p"]), jnp.float32).at[:, :rand_var.shape[1]].set(rand_var)
        z3 = z3 + bdot(r, params["w3b"])
    h3 = jax.nn.sigmoid(z3)
    a = jax.nn.sigmoid(bdot(h3, params["w4"]) + params["b4"])
    out = a * (action_range[1] - action_range[0]) + action_range[0]
    return out[:, :params["action_dim"]]


if __name__ == "__main__":
    key = jax.random.PRNGKey(0)
    k_param, k_state, k_rand = jax.random.split(key, 3)

    batch = 2
    state_dim = 8
    action_dim = 4
    rand_var_dim = 16
    action_range = (-2.0, 2.0)

    params = init_params(k_param, state_dim, action_dim, rand_var_dim)
    state = jax.random.normal(k_state, (batch, state_dim), jnp.float32)

    # mode='Std' -> rand_var is all zeros (fast path, no rand inputs at all).
    # mode='Ent' -> rand_var ~ N(0,1), sampled by the caller and passed in.
    rand_var_ent = jax.random.normal(k_rand, (batch, rand_var_dim), jnp.float32)

    out_std = jax.block_until_ready(actor_forward(state, params, action_range))
    out_ent = jax.block_until_ready(actor_forward(state, params, action_range, rand_var_ent))

    ref_std = actor_forward_ref(state, params, action_range)
    ref_ent = actor_forward_ref(state, params, action_range, rand_var_ent)

    assert out_std.shape == (batch, action_dim)
    assert out_ent.shape == (batch, action_dim)
    assert jnp.allclose(out_std, ref_std, atol=2e-2), "Std mode mismatch vs reference"
    assert jnp.allclose(out_ent, ref_ent, atol=2e-2), "Ent mode mismatch vs reference"

    print("KERNEL_OK")
</pallas_src>

<mosaic_0001>
module attributes {stable_mosaic.version = 11 : i64} {
  func.func @kernel(%arg0: memref<2xf32, #tpu.memory_space<smem>>, %arg1: memref<2x8xf32, #tpu.memory_space<vmem>>, %arg2: memref<16x512xbf16, #tpu.memory_space<vmem>>, %arg3: memref<1x512xf32, #tpu.memory_space<vmem>>, %arg4: memref<512x384xbf16, #tpu.memory_space<vmem>>, %arg5: memref<1x384xf32, #tpu.memory_space<vmem>>, %arg6: memref<384x128xbf16, #tpu.memory_space<vmem>>, %arg7: memref<1x128xf32, #tpu.memory_space<vmem>>, %arg8: memref<128x128xbf16, #tpu.memory_space<vmem>>, %arg9: memref<1x128xf32, #tpu.memory_space<vmem>>, %arg10: memref<16x128xf32, #tpu.memory_space<vmem>>, %arg11: memref<16x16xf32, #tpu.memory_space<vmem>>) attributes {dimension_semantics = [], scalar_prefetch = 0 : i64, scratch_operands = 1 : i64, tpu.core_type = #tpu.core_type<tc>} {
    %cst = arith.constant 0.000000e+00 : f32
    %0 = vector.broadcast %cst : f32 to vector<16x16xf32>
    %c0 = arith.constant 0 : index
    %c0_0 = arith.constant 0 : index
    %1 = vector.load %arg11[%c0, %c0_0] : memref<16x16xf32, #tpu.memory_space<vmem>>, vector<16x16xf32>
    tpu.vector_store %arg11[%c0, %c0_0], %0 {strides = array<i32>} : memref<16x16xf32, #tpu.memory_space<vmem>>, vector<16x16xf32>,
    %c0_1 = arith.constant 0 : index
    %c0_2 = arith.constant 0 : index
    %2 = vector.load %arg1[%c0_1, %c0_2] : memref<2x8xf32, #tpu.memory_space<vmem>>, vector<2x8xf32>
    %c0_3 = arith.constant 0 : index
    %c0_4 = arith.constant 0 : index
    %3 = vector.load %arg11[%c0_3, %c0_4] : memref<16x16xf32, #tpu.memory_space<vmem>>, vector<2x8xf32>
    tpu.vector_store %arg11[%c0_3, %c0_4], %2 {strides = array<i32>} : memref<16x16xf32, #tpu.memory_space<vmem>>, vector<2x8xf32>,
    %c0_5 = arith.constant 0 : index
    %c0_6 = arith.constant 0 : index
    %4 = vector.load %arg11[%c0_5, %c0_6] : memref<16x16xf32, #tpu.memory_space<vmem>>, vector<16x16xf32>
    %5 = arith.truncf %4 : vector<16x16xf32> to vector<16x16xbf16>
    %c0_7 = arith.constant 0 : index
    %c0_8 = arith.constant 0 : index
    %6 = vector.load %arg2[%c0_7, %c0_8] : memref<16x512xbf16, #tpu.memory_space<vmem>>, vector<16x512xbf16>
    %cst_9 = arith.constant dense<0.000000e+00> : vector<16x512xf32>
    %7 = tpu.matmul %5, %6, %cst_9 {dimension_numbers = #tpu.dot_dimension_numbers<[1], [0], [0], [1], [0, 0, 1, 1], [], []>} : vector<16x16xbf16>, vector<16x512xbf16>, vector<16x512xf32> -> vector<16x512xf32>
    %c0_10 = arith.constant 0 : index
    %c0_11 = arith.constant 0 : index
    %8 = vector.load %arg3[%c0_10, %c0_11] : memref<1x512xf32, #tpu.memory_space<vmem>>, vector<1x512xf32>
    %9 = vector.broadcast %8 : vector<1x512xf32> to vector<16x512xf32>
    %10 = arith.addf %7, %9 : vector<16x512xf32>
    %cst_12 = arith.constant 0.000000e+00 : f32
    %11 = vector.broadcast %cst_12 : f32 to vector<16x512xf32>
    %12 = arith.maximumf %10, %11 : vector<16x512xf32>
    %13 = arith.truncf %12 : vector<16x512xf32> to vector<16x512xbf16>
    %c0_13 = arith.constant 0 : index
    %c0_14 = arith.constant 0 : index
    %14 = vector.load %arg4[%c0_13, %c0_14] : memref<512x384xbf16, #tpu.memory_space<vmem>>, vector<512x384xbf16>
    %cst_15 = arith.constant dense<0.000000e+00> : vector<16x384xf32>
    %15 = tpu.matmul %13, %14, %cst_15 {dimension_numbers = #tpu.dot_dimension_numbers<[1], [0], [0], [1], [0, 0, 1, 1], [], []>} : vector<16x512xbf16>, vector<512x384xbf16>, vector<16x384xf32> -> vector<16x384xf32>
    %c0_16 = arith.constant 0 : index
    %c0_17 = arith.constant 0 : index
    %16 = vector.load %arg5[%c0_16, %c0_17] : memref<1x384xf32, #tpu.memory_space<vmem>>, vector<1x384xf32>
    %17 = vector.broadcast %16 : vector<1x384xf32> to vector<16x384xf32>
    %18 = arith.addf %15, %17 : vector<16x384xf32>
    %cst_18 = arith.constant 0.000000e+00 : f32
    %19 = vector.broadcast %cst_18 : f32 to vector<16x384xf32>
    %20 = arith.maximumf %18, %19 : vector<16x384xf32>
    %21 = arith.truncf %20 : vector<16x384xf32> to vector<16x384xbf16>
    %c0_19 = arith.constant 0 : index
    %c0_20 = arith.constant 0 : index
    %22 = vector.load %arg6[%c0_19, %c0_20] : memref<384x128xbf16, #tpu.memory_space<vmem>>, vector<384x128xbf16>
    %cst_21 = arith.constant dense<0.000000e+00> : vector<16x128xf32>
    %23 = tpu.matmul %21, %22, %cst_21 {dimension_numbers = #tpu.dot_dimension_numbers<[1], [0], [0], [1], [0, 0, 1, 1], [], []>} : vector<16x384xbf16>, vector<384x128xbf16>, vector<16x128xf32> -> vector<16x128xf32>
    %c0_22 = arith.constant 0 : index
    %c0_23 = arith.constant 0 : index
    %24 = vector.load %arg7[%c0_22, %c0_23] : memref<1x128xf32, #tpu.memory_space<vmem>>, vector<1x128xf32>
    %25 = vector.broadcast %24 : vector<1x128xf32> to vector<16x128xf32>
    %26 = arith.addf %23, %25 : vector<16x128xf32>
    %27 = arith.negf %26 : vector<16x128xf32>
    %28 = math.exp %27 : vector<16x128xf32>
    %cst_24 = arith.constant 1.000000e+00 : f32
    %29 = vector.broadcast %cst_24 : f32 to vector<16x128xf32>
    %30 = arith.addf %29, %28 : vector<16x128xf32>
    %31 = arith.divf %29, %30 : vector<16x128xf32>
    %32 = arith.truncf %31 : vector<16x128xf32> to vector<16x128xbf16>
    %c0_25 = arith.constant 0 : index
    %c0_26 = arith.constant 0 : index
    %33 = vector.load %arg8[%c0_25, %c0_26] : memref<128x128xbf16, #tpu.memory_space<vmem>>, vector<128x128xbf16>
    %cst_27 = arith.constant dense<0.000000e+00> : vector<16x128xf32>
    %34 = tpu.matmul %32, %33, %cst_27 {dimension_numbers = #tpu.dot_dimension_numbers<[1], [0], [0], [1], [0, 0, 1, 1], [], []>} : vector<16x128xbf16>, vector<128x128xbf16>, vector<16x128xf32> -> vector<16x128xf32>
    %c0_28 = arith.constant 0 : index
    %c0_29 = arith.constant 0 : index
    %35 = vector.load %arg9[%c0_28, %c0_29] : memref<1x128xf32, #tpu.memory_space<vmem>>, vector<1x128xf32>
    %36 = vector.broadcast %35 : vector<1x128xf32> to vector<16x128xf32>
    %37 = arith.addf %34, %36 : vector<16x128xf32>
    %38 = arith.negf %37 : vector<16x128xf32>
    %39 = math.exp %38 : vector<16x128xf32>
    %cst_30 = arith.constant 1.000000e+00 : f32
    %40 = vector.broadcast %cst_30 : f32 to vector<16x128xf32>
    %41 = arith.addf %40, %39 : vector<16x128xf32>
    %42 = arith.divf %40, %41 : vector<16x128xf32>
    %c0_31 = arith.constant 0 : index
    %43 = memref.load %arg0[%c0_31] : memref<2xf32, #tpu.memory_space<smem>>
    %c1 = arith.constant 1 : index
    %44 = memref.load %arg0[%c1] : memref<2xf32, #tpu.memory_space<smem>>
    %45 = arith.subf %44, %43 : f32
    %46 = vector.broadcast %45 : f32 to vector<16x128xf32>
    %47 = arith.mulf %42, %46 : vector<16x128xf32>
    %48 = vector.broadcast %43 : f32 to vector<16x128xf32>
    %49 = arith.addf %47, %48 : vector<16x128xf32>
    %c0_32 = arith.constant 0 : index
    %c0_33 = arith.constant 0 : index
    %50 = vector.load %arg10[%c0_32, %c0_33] : memref<16x128xf32, #tpu.memory_space<vmem>>, vector<16x128xf32>
    tpu.vector_store %arg10[%c0_32, %c0_33], %49 {strides = array<i32>} : memref<16x128xf32, #tpu.memory_space<vmem>>, vector<16x128xf32>,
    return
  }
}

</mosaic_0001>

<llo_original>
// kernel: tpu_custom_call.1
$region0: #{tpu_custom_call.1}
  #allocation0 [shape = 'u32[]', space=smem, size = 0x4, offset = 0x4, fixed_abs, tag = 'smem constant byte address 0x4 - core index']
  #allocation1 [shape = 'u32[144,128]{1,0:T(1,128)}', space=vmem, size = 0x12000, scoped, tag = 'internal scratch']
  #allocation2 [shape = 'f32[16,16]{1,0:T(8,128)}', space=vmem, size = 0x2000, scoped, tag = 'scratch operand']
  %s0 = inlined_call_operand.hbm [shape: f32[2], index: 0, kind: input, shape index: {}]
  %s1 = inlined_call_operand.hbm [shape: f32[2,8], index: 1, kind: input, shape index: {}]
  %s2 = inlined_call_operand.hbm [shape: bf16[16,512], index: 2, kind: input, shape index: {}]
  %s3 = inlined_call_operand.vmem [shape: f32[1,512], index: 3, kind: input, shape index: {}]
  %s4 = inlined_call_operand.hbm [shape: bf16[512,384], index: 4, kind: input, shape index: {}]
  %s5 = inlined_call_operand.vmem [shape: f32[1,384], index: 5, kind: input, shape index: {}]
  %s6 = inlined_call_operand.hbm [shape: bf16[384,128], index: 6, kind: input, shape index: {}]
  %s7 = inlined_call_operand.vmem [shape: f32[1,128], index: 7, kind: input, shape index: {}]
  %s8 = inlined_call_operand.hbm [shape: bf16[128,128], index: 8, kind: input, shape index: {}]
  %s9 = inlined_call_operand.vmem [shape: f32[1,128], index: 9, kind: input, shape index: {}]
  %s10 = inlined_call_operand.hbm [shape: f32[16,128], index: 10, kind: output, shape index: {}]
  %s11 = sld [smem:[#allocation0]]
  $region74: #{tpu_custom_call.1} parent=0
    _
  %s13 = ssub.s32 1, %s11
  %s14 = scalar_select 0, %s13, %s11
  $region1: #{tpu_custom_call.1} parent=0
    #allocation3 [shape = 'u8[512]{0}', space=smem, size = 0x200, scoped, tag = 'input window, operand 0, single buffered']
    #allocation4 [shape = 's32[1]{0}', space=sflag, size = 0x4, scoped, tag = 'scoped memory for tpu_custom_call.1']
    #allocation5 [shape = 's32[1]{0}', space=sflag, size = 0x4, scoped, tag = 'scoped memory for tpu_custom_call.1']
    #allocation6 [shape = 's32[1]{0}', space=sflag, size = 0x4, scoped, tag = 'scoped memory for tpu_custom_call.1']
    #allocation7 [shape = 'u8[1024]{0}', space=vmem, size = 0x400, scoped, tag = 'input window, operand 1, single buffered']
    #allocation8 [shape = 'u8[16384]{0}', space=vmem, size = 0x4000, scoped, tag = 'input window, operand 2, single buffered']
    #allocation9 [shape = 's32[1]{0}', space=sflag, size = 0x4, scoped, tag = 'scoped memory for tpu_custom_call.1']
    #allocation10 [shape = 'u8[393216]{0}', space=vmem, size = 0x60000, scoped, tag = 'input window, operand 4, single buffered']
    #allocation11 [shape = 'u8[98304]{0}', space=vmem, size = 0x18000, scoped, tag = 'input window, operand 6, single buffered']
    #allocation12 [shape = 's32[1]{0}', space=sflag, size = 0x4, scoped, tag = 'scoped memory for tpu_custom_call.1']
    #allocation13 [shape = 'u8[32768]{0}', space=vmem, size = 0x8000, scoped, tag = 'input window, operand 8, single buffered']
    #allocation14 [shape = 'u8[8192]{0}', space=vmem, size = 0x2000, scoped, tag = 'output window, operand 0, single buffered']
    %15 = vsyncpa [#allocation6], 0
    %16 = vsyncpa [#allocation4], 0
    %17 = vsyncpa [#allocation9], 0
    %18 = vsyncpa [#allocation12], 0
    %19 = vsyncpa [#allocation5], 0
    // Predicated region
    $region2: #{tpu_custom_call.1} parent=1 // pred_check
      _
    $region3: #{tpu_custom_call.1} parent=1 // pred_check_branch
      %21 = sbr.rel (0) target = $region5
    $region4: #{tpu_custom_call.1} parent=1 // pred_region
      %s23 = ssub.s32 16, 16
      %24 = vsyncadd [#allocation6], %s23
      %27 = dma.hbm_to_smem %s0, 16, [#allocation3], [#allocation6]
    $region5: #{tpu_custom_call.1} parent=1 // pred_fallthru
      _
    // Predicated region
    $region6: #{tpu_custom_call.1} parent=1 // pred_check
      _
    $region7: #{tpu_custom_call.1} parent=1 // pred_check_branch
      %29 = sbr.rel (0) target = $region9
    $region8: #{tpu_custom_call.1} parent=1 // pred_region
      %s31 = ssub.s32 32, 32
      %32 = vsyncadd [#allocation4], %s31
      %s34 = sshll.u32 [#allocation7], 4
      %s35 = int_to_ptr.vmem [resolvable:$true] %s34
      %37 = dma.hbm_to_vmem [thread:$0]  %s1, 32, %s35, [#allocation4]
    $region9: #{tpu_custom_call.1} parent=1 // pred_fallthru
      _
    // Predicated region
    $region10: #{tpu_custom_call.1} parent=1 // pred_check
      _
    $region11: #{tpu_custom_call.1} parent=1 // pred_check_branch
      %39 = sbr.rel (0) target = $region13
    $region12: #{tpu_custom_call.1} parent=1 // pred_region
      %s41 = ssub.s32 512, 512
      %42 = vsyncadd [#allocation9], %s41
      %s43 = sshll.u32 [#allocation8], 4
      %s44 = int_to_ptr.vmem [resolvable:$true] %s43
      %49 = dma.hbm_to_vmem [thread:$0]  %s2, 512, %s44, [#allocation9], 256, 256, 16
    $region13: #{tpu_custom_call.1} parent=1 // pred_fallthru
      _
    // Predicated region
    $region14: #{tpu_custom_call.1} parent=1 // pred_check
      _
    $region15: #{tpu_custom_call.1} parent=1 // pred_check_branch
      %51 = sbr.rel (0) target = $region17
    $region16: #{tpu_custom_call.1} parent=1 // pred_region
      _
    $region17: #{tpu_custom_call.1} parent=1 // pred_fallthru
      _
    // Predicated region
    $region18: #{tpu_custom_call.1} parent=1 // pred_check
      _
    $region19: #{tpu_custom_call.1} parent=1 // pred_check_branch
      %53 = sbr.rel (0) target = $region21
    $region20: #{tpu_custom_call.1} parent=1 // pred_region
      %s55 = ssub.s32 12288, 12288
      %56 = vsyncadd [#allocation9], %s55
      %s57 = sshll.u32 [#allocation10], 4
      %s58 = int_to_ptr.vmem [resolvable:$true] %s57
      %63 = dma.hbm_to_vmem [thread:$0]  %s4, 12288, %s58, [#allocation9], 192, 192, 12
    $region21: #{tpu_custom_call.1} parent=1 // pred_fallthru
      _
    // Predicated region
    $region22: #{tpu_custom_call.1} parent=1 // pred_check
      _
    $region23: #{tpu_custom_call.1} parent=1 // pred_check_branch
      %65 = sbr.rel (0) target = $region25
    $region24: #{tpu_custom_call.1} parent=1 // pred_region
      _
    $region25: #{tpu_custom_call.1} parent=1 // pred_fallthru
      _
    // Predicated region
    $region26: #{tpu_custom_call.1} parent=1 // pred_check
      _
    $region27: #{tpu_custom_call.1} parent=1 // pred_check_branch
      %67 = sbr.rel (0) target = $region29
    $region28: #{tpu_custom_call.1} parent=1 // pred_region
      %s69 = ssub.s32 3072, 3072
      %70 = vsyncadd [#allocation12], %s69
      %s71 = sshll.u32 [#allocation11], 4
      %s72 = int_to_ptr.vmem [resolvable:$true] %s71
      %77 = dma.hbm_to_vmem [thread:$0]  %s6, 3072, %s72, [#allocation12], 64, 64, 4
    $region29: #{tpu_custom_call.1} parent=1 // pred_fallthru
      _
    // Predicated region
    $region30: #{tpu_custom_call.1} parent=1 // pred_check
      _
    $region31: #{tpu_custom_call.1} parent=1 // pred_check_branch
      %79 = sbr.rel (0) target = $region33
    $region32: #{tpu_custom_call.1} parent=1 // pred_region
      _
    $region33: #{tpu_custom_call.1} parent=1 // pred_fallthru
      _
    // Predicated region
    $region34: #{tpu_custom_call.1} parent=1 // pred_check
      _
    $region35: #{tpu_custom_call.1} parent=1 // pred_check_branch
      %81 = sbr.rel (0) target = $region37
    $region36: #{tpu_custom_call.1} parent=1 // pred_region
      %s83 = ssub.s32 1024, 1024
      %84 = vsyncadd [#allocation12], %s83
      %s85 = sshll.u32 [#allocation13], 4
      %s86 = int_to_ptr.vmem [resolvable:$true] %s85
      %91 = dma.hbm_to_vmem [thread:$0]  %s8, 1024, %s86, [#allocation12], 64, 64, 4
    $region37: #{tpu_custom_call.1} parent=1 // pred_fallthru
      _
    // Predicated region
    $region38: #{tpu_custom_call.1} parent=1 // pred_check
      _
    $region39: #{tpu_custom_call.1} parent=1 // pred_check_branch
      %93 = sbr.rel (0) target = $region41
    $region40: #{tpu_custom_call.1} parent=1 // pred_region
      _
    $region41: #{tpu_custom_call.1} parent=1 // pred_fallthru
      _
    // Predicated region
    $region42: #{tpu_custom_call.1} parent=1 // pred_check
      _
    $region43: #{tpu_custom_call.1} parent=1 // pred_check_branch
      %95 = sbr.rel (0) target = $region45
    $region44: #{tpu_custom_call.1} parent=1 // pred_region
      %96 = dma.done [#allocation6], 16
    $region45: #{tpu_custom_call.1} parent=1 // pred_fallthru
      _
    // Predicated region
    $region46: #{tpu_custom_call.1} parent=1 // pred_check
      _
    $region47: #{tpu_custom_call.1} parent=1 // pred_check_branch
      %98 = sbr.rel (0) target = $region49
    $region48: #{tpu_custom_call.1} parent=1 // pred_region
      %99 = dma.done [#allocation4], 32
    $region49: #{tpu_custom_call.1} parent=1 // pred_fallthru
      _
    // Predicated region
    $region50: #{tpu_custom_call.1} parent=1 // pred_check
      _
    $region51: #{tpu_custom_call.1} parent=1 // pred_check_branch
      %101 = sbr.rel (0) target = $region53
    $region52: #{tpu_custom_call.1} parent=1 // pred_region
      %102 = dma.done [#allocation9], 512
    $region53: #{tpu_custom_call.1} parent=1 // pred_fallthru
      _
    // Predicated region
    $region54: #{tpu_custom_call.1} parent=1 // pred_check
      _
    $region55: #{tpu_custom_call.1} parent=1 // pred_check_branch
      %104 = sbr.rel (0) target = $region57
    $region56: #{tpu_custom_call.1} parent=1 // pred_region
      %105 = dma.done [#allocation9], 12288
    $region57: #{tpu_custom_call.1} parent=1 // pred_fallthru
      _
    // Predicated region
    $region58: #{tpu_custom_call.1} parent=1 // pred_check
      _
    $region59: #{tpu_custom_call.1} parent=1 // pred_check_branch
      %107 = sbr.rel (0) target = $region61
    $region60: #{tpu_custom_call.1} parent=1 // pred_region
      %108 = dma.done [#allocation12], 3072
    $region61: #{tpu_custom_call.1} parent=1 // pred_fallthru
      _
    // Predicated region
    $region62: #{tpu_custom_call.1} parent=1 // pred_check
      _
    $region63: #{tpu_custom_call.1} parent=1 // pred_check_branch
      %110 = sbr.rel (0) target = $region65
    $region64: #{tpu_custom_call.1} parent=1 // pred_region
      %111 = dma.done [#allocation12], 1024
    $region65: #{tpu_custom_call.1} parent=1 // pred_fallthru
      _
    %112 = sfence
    %vm114 = vcmask 130048
    %115 = vst.msk [vmem:[#allocation2] sm:$0xff] %vm114, 0.0
    %116 = vst.msk [vmem:[#allocation2 + $0x8] sm:$0xff] %vm114, 0.0
    %v117 = vld [vmem:[#allocation7] sm:$0x3]
    %vm118 = vcmask 58368
    %119 = vst.msk [vmem:[#allocation2] sm:$0x3] %vm118, %v117
    %v120 = vld [vmem:[#allocation2] sm:$0xff]
    %v121 = vld [vmem:[#allocation2 + $0x8] sm:$0xff]
    %v122 = vpack.c.bf16 %v121, %v120
    %v123 = vld [vmem:[#allocation8] sm:$0xff]
    %v124 = vld [vmem:[#allocation8 + $0x8] sm:$0xff]
    %v125 = vld [vmem:[#allocation8 + $0x10] sm:$0xff]
    %v126 = vld [vmem:[#allocation8 + $0x18] sm:$0xff]
    %v127 = vld [vmem:[%s3] sm:$0xf]
    %v129 = vlaneseq
    %v130 = vshrl.u32 %v129, 7
    %v131 = vsub.s32 0, %v130
    %v132 = vrot.slane %v127, %v131
    %v133 = vlaneseq
    %v134 = vshrl.u32 %v133, 7
    %v135 = vsub.s32 1, %v134
    %v136 = vrot.slane %v127, %v135
    %v137 = vlaneseq
    %v138 = vshrl.u32 %v137, 7
    %v139 = vsub.s32 2, %v138
    %v140 = vrot.slane %v127, %v139
    %v141 = vlaneseq
    %v142 = vshrl.u32 %v141, 7
    %v143 = vsub.s32 3, %v142
    %v144 = vrot.slane %v127, %v143
    %v153 = vunpack.c.l.b16 %v123
    %v154 = vunpack.c.h.b16 %v123
    %v155 = vunpack.c.l.b16 %v124
    %v156 = vunpack.c.h.b16 %v124
    %v157 = vunpack.c.l.b16 %v125
    %v158 = vunpack.c.h.b16 %v125
    %v159 = vunpack.c.l.b16 %v126
    %v160 = vunpack.c.h.b16 %v126
    %v161 = vpack.c.b16 %v157, %v153
    %v162 = vpack.c.b16 %v158, %v154
    %v163 = vpack.c.b16 %v159, %v155
    %v164 = vpack.c.b16 %v160, %v156
    %v170 = vsel %vm114, %v122, 0
    %172 = vmatprep.subr.bf16.mxu0 %v162
    %173 = vmatpush1.bf16.msra.mxu0 %v161
    %174 = vmatprep.subr.bf16.mxu0 0
    %175 = vmatpush1.bf16.msra.mxu0 0
    %176 = vmatprep.subr.bf16.mxu0 0
    %177 = vmatpush1.bf16.msra.mxu0 0
    %178 = vmatprep.subr.bf16.mxu0 0
    %179 = vmatpush1.bf16.msra.mxu0 0
    %180 = vmatprep.subr.bf16.mxu0 0
    %181 = vmatpush1.bf16.msra.mxu0 0
    %182 = vmatprep.subr.bf16.mxu0 0
    %183 = vmatpush1.bf16.msra.mxu0 0
    %184 = vmatprep.subr.bf16.mxu0 0
    %185 = vmatpush1.bf16.msra.mxu0 0
    %186 = vmatprep.subr.bf16.mxu0 0
    %187 = vmatpush1.bf16.msra.mxu0 0
    %188 = vmatprep.subr.bf16.mxu0 0
    %189 = vmatpush1.bf16.msra.mxu0 0
    %190 = vmatprep.subr.bf16.mxu0 0
    %191 = vmatpush1.bf16.msra.mxu0 0
    %192 = vmatprep.subr.bf16.mxu0 0
    %193 = vmatpush1.bf16.msra.mxu0 0
    %194 = vmatprep.subr.bf16.mxu0 0
    %195 = vmatpush1.bf16.msra.mxu0 0
    %196 = vmatprep.subr.bf16.mxu0 0
    %197 = vmatpush1.bf16.msra.mxu0 0
    %198 = vmatprep.subr.bf16.mxu0 0
    %199 = vmatpush1.bf16.msra.mxu0 0
    %200 = vmatprep.subr.bf16.mxu0 0
    %201 = vmatpush1.bf16.msra.mxu0 0
    %202 = vmatprep.subr.bf16.mxu0 0
    %203 = vmatpush1.bf16.msra.mxu0 0
    %204 = vmatprep.mubr.bf16.mxu0 0
    %205 = vmatmul.mubr.bf16.gmra.mrb[0].mxu0 %v170
    %v206 = vpop.f32.mrb[0].mxu0
    %v207 = vadd.f32 %v132, %v206
    %v208 = vpop.f32.mrb[0].mxu0
    %v209 = vadd.f32 %v136, %v208
    %v210 = vpop.f32.mrb[0].mxu0
    %v211 = vadd.f32 %v132, %v210
    %v212 = vpop.f32.mrb[0].mxu0
    %v213 = vadd.f32 %v136, %v212
    %214 = vdwg.mxu0
    %215 = vmatprep.subr.bf16.mxu0 %v164
    %216 = vmatpush1.bf16.msra.mxu0 %v163
    %217 = vmatprep.subr.bf16.mxu0 0
    %218 = vmatpush1.bf16.msra.mxu0 0
    %219 = vmatprep.subr.bf16.mxu0 0
    %220 = vmatpush1.bf16.msra.mxu0 0
    %221 = vmatprep.subr.bf16.mxu0 0
    %222 = vmatpush1.bf16.msra.mxu0 0
    %223 = vmatprep.subr.bf16.mxu0 0
    %224 = vmatpush1.bf16.msra.mxu0 0
    %225 = vmatprep.subr.bf16.mxu0 0
    %226 = vmatpush1.bf16.msra.mxu0 0
    %227 = vmatprep.subr.bf16.mxu0 0
    %228 = vmatpush1.bf16.msra.mxu0 0
    %229 = vmatprep.subr.bf16.mxu0 0
    %230 = vmatpush1.bf16.msra.mxu0 0
    %231 = vmatprep.subr.bf16.mxu0 0
    %232 = vmatpush1.bf16.msra.mxu0 0
    %233 = vmatprep.subr.bf16.mxu0 0
    %234 = vmatpush1.bf16.msra.mxu0 0
    %235 = vmatprep.subr.bf16.mxu0 0
    %236 = vmatpush1.bf16.msra.mxu0 0
    %237 = vmatprep.subr.bf16.mxu0 0
    %238 = vmatpush1.bf16.msra.mxu0 0
    %239 = vmatprep.subr.bf16.mxu0 0
    %240 = vmatpush1.bf16.msra.mxu0 0
    %241 = vmatprep.subr.bf16.mxu0 0
    %242 = vmatpush1.bf16.msra.mxu0 0
    %243 = vmatprep.subr.bf16.mxu0 0
    %244 = vmatpush1.bf16.msra.mxu0 0
    %245 = vmatprep.subr.bf16.mxu0 0
    %246 = vmatpush1.bf16.msra.mxu0 0
    %247 = vmatprep.mubr.bf16.mxu0 0
    %248 = vmatmul.mubr.bf16.gmra.mrb[0].mxu0 %v170
    %v249 = vpop.f32.mrb[0].mxu0
    %v250 = vadd.f32 %v140, %v249
    %v251 = vpop.f32.mrb[0].mxu0
    %v252 = vadd.f32 %v144, %v251
    %v253 = vpop.f32.mrb[0].mxu0
    %v254 = vadd.f32 %v140, %v253
    %v255 = vpop.f32.mrb[0].mxu0
    %v256 = vadd.f32 %v144, %v255
    %257 = vdwg.mxu0
    %v258 = vmax.f32 %v207, 0.0
    %v259 = vmax.f32 %v209, 0.0
    %v260 = vmax.f32 %v250, 0.0
    %v261 = vmax.f32 %v252, 0.0
    %v262 = vmax.f32 %v211, 0.0
    %v263 = vmax.f32 %v213, 0.0
    %v264 = vmax.f32 %v254, 0.0
    %v265 = vmax.f32 %v256, 0.0
    %v266 = vpack.c.bf16 %v262, %v258
    %v267 = vpack.c.bf16 %v263, %v259
    %v268 = vpack.c.bf16 %v264, %v260
    %v269 = vpack.c.bf16 %v265, %v261
    %v270 = vld [vmem:[#allocation10] sm:$0xff]
    %v271 = vld [vmem:[#allocation10 + $0x8] sm:$0xf]
    %v272 = vld [vmem:[#allocation10 + $0xc] sm:$0xff]
    %v273 = vld [vmem:[#allocation10 + $0x14] sm:$0xf]
    %v274 = vld [vmem:[#allocation10 + $0x18] sm:$0xff]
    %v275 = vld [vmem:[#allocation10 + $0x20] sm:$0xf]
    %v276 = vld [vmem:[#allocation10 + $0x24] sm:$0xff]
    %v277 = vld [vmem:[#allocation10 + $0x2c] sm:$0xf]
    %v278 = vld [vmem:[#allocation10 + $0x30] sm:$0xff]
    %v279 = vld [vmem:[#allocation10 + $0x38] sm:$0xf]
    %v280 = vld [vmem:[#allocation10 + $0x3c] sm:$0xff]
    %v281 = vld [vmem:[#allocation10 + $0x44] sm:$0xf]
    %v282 = vld [vmem:[#allocation10 + $0x48] sm:$0xff]
    %v283 = vld [vmem:[#allocation10 + $0x50] sm:$0xf]
    %v284 = vld [vmem:[#allocation10 + $0x54] sm:$0xff]
    %v285 = vld [vmem:[#allocation10 + $0x5c] sm:$0xf]
    %v286 = vld [vmem:[#allocation10 + $0x60] sm:$0xff]
    %v287 = vld [vmem:[#allocation10 + $0x68] sm:$0xf]
    %v288 = vld [vmem:[#allocation10 + $0x6c] sm:$0xff]
    %v289 = vld [vmem:[#allocation10 + $0x74] sm:$0xf]
    %v290 = vld [vmem:[#allocation10 + $0x78] sm:$0xff]
    %v291 = vld [vmem:[#allocation10 + $0x80] sm:$0xf]
    %v292 = vld [vmem:[#allocation10 + $0x84] sm:$0xff]
    %v293 = vld [vmem:[#allocation10 + $0x8c] sm:$0xf]
    %v294 = vld [vmem:[#allocation10 + $0x90] sm:$0xff]
    %v295 = vld [vmem:[#allocation10 + $0x98] sm:$0xf]
    %v296 = vld [vmem:[#allocation10 + $0x9c] sm:$0xff]
    %v297 = vld [vmem:[#allocation10 + $0xa4] sm:$0xf]
    %v298 = vld [vmem:[#allocation10 + $0xa8] sm:$0xff]
    %v299 = vld [vmem:[#allocation10 + $0xb0] sm:$0xf]
    %v300 = vld [vmem:[#allocation10 + $0xb4] sm:$0xff]
    %v301 = vld [vmem:[#allocation10 + $0xbc] sm:$0xf]
    %v302 = vld [vmem:[#allocation10 + $0xc0] sm:$0xff]
    %v303 = vld [vmem:[#allocation10 + $0xc8] sm:$0xf]
    %v304 = vld [vmem:[#allocation10 + $0xcc] sm:$0xff]
    %v305 = vld [vmem:[#allocation10 + $0xd4] sm:$0xf]
    %v306 = vld [vmem:[#allocation10 + $0xd8] sm:$0xff]
    %v307 = vld [vmem:[#allocation10 + $0xe0] sm:$0xf]
    %v308 = vld [vmem:[#allocation10 + $0xe4] sm:$0xff]
    %v309 = vld [vmem:[#allocation10 + $0xec] sm:$0xf]
    %v310 = vld [vmem:[#allocation10 + $0xf0] sm:$0xff]
    %v311 = vld [vmem:[#allocation10 + $0xf8] sm:$0xf]
    %v312 = vld [vmem:[#allocation10 + $0xfc] sm:$0xff]
    %v313 = vld [vmem:[#allocation10 + $0x104] sm:$0xf]
    %v314 = vld [vmem:[#allocation10 + $0x108] sm:$0xff]
    %v315 = vld [vmem:[#allocation10 + $0x110] sm:$0xf]
    %v316 = vld [vmem:[#allocation10 + $0x114] sm:$0xff]
    %v317 = vld [vmem:[#allocation10 + $0x11c] sm:$0xf]
    %v318 = vld [vmem:[#allocation10 + $0x120] sm:$0xff]
    %v319 = vld [vmem:[#allocation10 + $0x128] sm:$0xf]
    %v320 = vld [vmem:[#allocation10 + $0x12c] sm:$0xff]
    %v321 = vld [vmem:[#allocation10 + $0x134] sm:$0xf]
    %v322 = vld [vmem:[#allocation10 + $0x138] sm:$0xff]
    %v323 = vld [vmem:[#allocation10 + $0x140] sm:$0xf]
    %v324 = vld [vmem:[#allocation10 + $0x144] sm:$0xff]
    %v325 = vld [vmem:[#allocation10 + $0x14c] sm:$0xf]
    %v326 = vld [vmem:[#allocation10 + $0x150] sm:$0xff]
    %v327 = vld [vmem:[#allocation10 + $0x158] sm:$0xf]
    %v328 = vld [vmem:[#allocation10 + $0x15c] sm:$0xff]
    %v329 = vld [vmem:[#allocation10 + $0x164] sm:$0xf]
    %v330 = vld [vmem:[#allocation10 + $0x168] sm:$0xff]
    %v331 = vld [vmem:[#allocation10 + $0x170] sm:$0xf]
    %v332 = vld [vmem:[#allocation10 + $0x174] sm:$0xff]
    %v333 = vld [vmem:[#allocation10 + $0x17c] sm:$0xf]
    %v334 = vld [vmem:[#allocation10 + $0x180] sm:$0xff]
    %v335 = vld [vmem:[#allocation10 + $0x188] sm:$0xf]
    %v336 = vld [vmem:[#allocation10 + $0x18c] sm:$0xff]
    %v337 = vld [vmem:[#allocation10 + $0x194] sm:$0xf]
    %v338 = vld [vmem:[#allocation10 + $0x198] sm:$0xff]
    %v339 = vld [vmem:[#allocation10 + $0x1a0] sm:$0xf]
    %v340 = vld [vmem:[#allocation10 + $0x1a4] sm:$0xff]
    %v341 = vld [vmem:[#allocation10 + $0x1ac] sm:$0xf]
    %v342 = vld [vmem:[#allocation10 + $0x1b0] sm:$0xff]
    %v343 = vld [vmem:[#allocation10 + $0x1b8] sm:$0xf]
    %v344 = vld [vmem:[#allocation10 + $0x1bc] sm:$0xff]
    %v345 = vld [vmem:[#allocation10 + $0x1c4] sm:$0xf]
    %v346 = vld [vmem:[#allocation10 + $0x1c8] sm:$0xff]
    %v347 = vld [vmem:[#allocation10 + $0x1d0] sm:$0xf]
    %v348 = vld [vmem:[#allocation10 + $0x1d4] sm:$0xff]
    %v349 = vld [vmem:[#allocation10 + $0x1dc] sm:$0xf]
    %v350 = vld [vmem:[#allocation10 + $0x1e0] sm:$0xff]
    %v351 = vld [vmem:[#allocation10 + $0x1e8] sm:$0xf]
    %v352 = vld [vmem:[#allocation10 + $0x1ec] sm:$0xff]
    %v353 = vld [vmem:[#allocation10 + $0x1f4] sm:$0xf]
    %v354 = vld [vmem:[#allocation10 + $0x1f8] sm:$0xff]
    %v355 = vld [vmem:[#allocation10 + $0x200] sm:$0xf]
    %v356 = vld [vmem:[#allocation10 + $0x204] sm:$0xff]
    %v357 = vld [vmem:[#allocation10 + $0x20c] sm:$0xf]
    %v358 = vld [vmem:[#allocation10 + $0x210] sm:$0xff]
    %v359 = vld [vmem:[#allocation10 + $0x218] sm:$0xf]
    %v360 = vld [vmem:[#allocation10 + $0x21c] sm:$0xff]
    %v361 = vld [vmem:[#allocation10 + $0x224] sm:$0xf]
    %v362 = vld [vmem:[#allocation10 + $0x228] sm:$0xff]
    %v363 = vld [vmem:[#allocation10 + $0x230] sm:$0xf]
    %v364 = vld [vmem:[#allocation10 + $0x234] sm:$0xff]
    %v365 = vld [vmem:[#allocation10 + $0x23c] sm:$0xf]
    %v366 = vld [vmem:[#allocation10 + $0x240] sm:$0xff]
    %v367 = vld [vmem:[#allocation10 + $0x248] sm:$0xf]
    %v368 = vld [vmem:[#allocation10 + $0x24c] sm:$0xff]
    %v369 = vld [vmem:[#allocation10 + $0x254] sm:$0xf]
    %v370 = vld [vmem:[#allocation10 + $0x258] sm:$0xff]
    %v371 = vld [vmem:[#allocation10 + $0x260] sm:$0xf]
    %v372 = vld [vmem:[#allocation10 + $0x264] sm:$0xff]
    %v373 = vld [vmem:[#allocation10 + $0x26c] sm:$0xf]
    %v374 = vld [vmem:[#allocation10 + $0x270] sm:$0xff]
    %v375 = vld [vmem:[#allocation10 + $0x278] sm:$0xf]
    %v376 = vld [vmem:[#allocation10 + $0x27c] sm:$0xff]
    %v377 = vld [vmem:[#allocation10 + $0x284] sm:$0xf]
    %v378 = vld [vmem:[#allocation10 + $0x288] sm:$0xff]
    %v379 = vld [vmem:[#allocation10 + $0x290] sm:$0xf]
    %v380 = vld [vmem:[#allocation10 + $0x294] sm:$0xff]
    %v381 = vld [vmem:[#allocation10 + $0x29c] sm:$0xf]
    %v382 = vld [vmem:[#allocation10 + $0x2a0] sm:$0xff]
    %v383 = vld [vmem:[#allocation10 + $0x2a8] sm:$0xf]
    %v384 = vld [vmem:[#allocation10 + $0x2ac] sm:$0xff]
    %v385 = vld [vmem:[#allocation10 + $0x2b4] sm:$0xf]
    %v386 = vld [vmem:[#allocation10 + $0x2b8] sm:$0xff]
    %v387 = vld [vmem:[#allocation10 + $0x2c0] sm:$0xf]
    %v388 = vld [vmem:[#allocation10 + $0x2c4] sm:$0xff]
    %v389 = vld [vmem:[#allocation10 + $0x2cc] sm:$0xf]
    %v390 = vld [vmem:[#allocation10 + $0x2d0] sm:$0xff]
    %v391 = vld [vmem:[#allocation10 + $0x2d8] sm:$0xf]
    %v392 = vld [vmem:[#allocation10 + $0x2dc] sm:$0xff]
    %v393 = vld [vmem:[#allocation10 + $0x2e4] sm:$0xf]
    %v394 = vld [vmem:[#allocation10 + $0x2e8] sm:$0xff]
    %v395 = vld [vmem:[#allocation10 + $0x2f0] sm:$0xf]
    %v396 = vld [vmem:[#allocation10 + $0x2f4] sm:$0xff]
    %v397 = vld [vmem:[#allocation10 + $0x2fc] sm:$0xf]
    %v398 = vld [vmem:[%s5] sm:$0x7]
    %v400 = vlaneseq
    %v401 = vshrl.u32 %v400, 7
    %v402 = vsub.s32 0, %v401
    %v403 = vrot.slane %v398, %v402
    %v404 = vlaneseq
    %v405 = vshrl.u32 %v404, 7
    %v406 = vsub.s32 1, %v405
    %v407 = vrot.slane %v398, %v406
    %v408 = vlaneseq
    %v409 = vshrl.u32 %v408, 7
    %v410 = vsub.s32 2, %v409
    %v411 = vrot.slane %v398, %v410
    %v543 = vunpack.c.l.b16 %v270
    %v544 = vunpack.c.h.b16 %v270
    %v545 = vunpack.c.l.b16 %v271
    %v546 = vunpack.c.l.b16 %v272
    %v547 = vunpack.c.h.b16 %v272
    %v548 = vunpack.c.l.b16 %v273
    %v549 = vunpack.c.l.b16 %v274
    %v550 = vunpack.c.h.b16 %v274
    %v551 = vunpack.c.l.b16 %v275
    %v552 = vunpack.c.l.b16 %v276
    %v553 = vunpack.c.h.b16 %v276
    %v554 = vunpack.c.l.b16 %v277
    %v555 = vunpack.c.l.b16 %v278
    %v556 = vunpack.c.h.b16 %v278
    %v557 = vunpack.c.l.b16 %v279
    %v558 = vunpack.c.l.b16 %v280
    %v559 = vunpack.c.h.b16 %v280
    %v560 = vunpack.c.l.b16 %v281
    %v561 = vunpack.c.l.b16 %v282
    %v562 = vunpack.c.h.b16 %v282
    %v563 = vunpack.c.l.b16 %v283
    %v564 = vunpack.c.l.b16 %v284
    %v565 = vunpack.c.h.b16 %v284
    %v566 = vunpack.c.l.b16 %v285
    %v567 = vunpack.c.l.b16 %v286
    %v568 = vunpack.c.h.b16 %v286
    %v569 = vunpack.c.l.b16 %v287
    %v570 = vunpack.c.l.b16 %v288
    %v571 = vunpack.c.h.b16 %v288
    %v572 = vunpack.c.l.b16 %v289
    %v573 = vunpack.c.l.b16 %v290
    %v574 = vunpack.c.h.b16 %v290
    %v575 = vunpack.c.l.b16 %v291
    %v576 = vunpack.c.l.b16 %v292
    %v577 = vunpack.c.h.b16 %v292
    %v578 = vunpack.c.l.b16 %v293
    %v579 = vunpack.c.l.b16 %v294
    %v580 = vunpack.c.h.b16 %v294
    %v581 = vunpack.c.l.b16 %v295
    %v582 = vunpack.c.l.b16 %v296
    %v583 = vunpack.c.h.b16 %v296
    %v584 = vunpack.c.l.b16 %v297
    %v585 = vunpack.c.l.b16 %v298
    %v586 = vunpack.c.h.b16 %v298
    %v587 = vunpack.c.l.b16 %v299
    %v588 = vunpack.c.l.b16 %v300
    %v589 = vunpack.c.h.b16 %v300
    %v590 = vunpack.c.l.b16 %v301
    %v591 = vunpack.c.l.b16 %v302
    %v592 = vunpack.c.h.b16 %v302
    %v593 = vunpack.c.l.b16 %v303
    %v594 = vunpack.c.l.b16 %v304
    %v595 = vunpack.c.h.b16 %v304
    %v596 = vunpack.c.l.b16 %v305
    %v597 = vunpack.c.l.b16 %v306
    %v598 = vunpack.c.h.b16 %v306
    %v599 = vunpack.c.l.b16 %v307
    %v600 = vunpack.c.l.b16 %v308
    %v601 = vunpack.c.h.b16 %v308
    %v602 = vunpack.c.l.b16 %v309
    %v603 = vunpack.c.l.b16 %v310
    %v604 = vunpack.c.h.b16 %v310
    %v605 = vunpack.c.l.b16 %v311
    %v606 = vunpack.c.l.b16 %v312
    %v607 = vunpack.c.h.b16 %v312
    %v608 = vunpack.c.l.b16 %v313
    %v609 = vunpack.c.l.b16 %v314
    %v610 = vunpack.c.h.b16 %v314
    %v611 = vunpack.c.l.b16 %v315
    %v612 = vunpack.c.l.b16 %v316
    %v613 = vunpack.c.h.b16 %v316
    %v614 = vunpack.c.l.b16 %v317
    %v615 = vunpack.c.l.b16 %v318
    %v616 = vunpack.c.h.b16 %v318
    %v617 = vunpack.c.l.b16 %v319
    %v618 = vunpack.c.l.b16 %v320
    %v619 = vunpack.c.h.b16 %v320
    %v620 = vunpack.c.l.b16 %v321
    %v621 = vunpack.c.l.b16 %v322
    %v622 = vunpack.c.h.b16 %v322
    %v623 = vunpack.c.l.b16 %v323
    %v624 = vunpack.c.l.b16 %v324
    %v625 = vunpack.c.h.b16 %v324
    %v626 = vunpack.c.l.b16 %v325
    %v627 = vunpack.c.l.b16 %v326
    %v628 = vunpack.c.h.b16 %v326
    %v629 = vunpack.c.l.b16 %v327
    %v630 = vunpack.c.l.b16 %v328
    %v631 = vunpack.c.h.b16 %v328
    %v632 = vunpack.c.l.b16 %v329
    %v633 = vunpack.c.l.b16 %v330
    %v634 = vunpack.c.h.b16 %v330
    %v635 = vunpack.c.l.b16 %v331
    %v636 = vunpack.c.l.b16 %v332
    %v637 = vunpack.c.h.b16 %v332
    %v638 = vunpack.c.l.b16 %v333
    %v639 = vunpack.c.l.b16 %v334
    %v640 = vunpack.c.h.b16 %v334
    %v641 = vunpack.c.l.b16 %v335
    %v642 = vunpack.c.l.b16 %v336
    %v643 = vunpack.c.h.b16 %v336
    %v644 = vunpack.c.l.b16 %v337
    %v645 = vunpack.c.l.b16 %v338
    %v646 = vunpack.c.h.b16 %v338
    %v647 = vunpack.c.l.b16 %v339
    %v648 = vunpack.c.l.b16 %v340
    %v649 = vunpack.c.h.b16 %v340
    %v650 = vunpack.c.l.b16 %v341
    %v651 = vunpack.c.l.b16 %v342
    %v652 = vunpack.c.h.b16 %v342
    %v653 = vunpack.c.l.b16 %v343
    %v654 = vunpack.c.l.b16 %v344
    %v655 = vunpack.c.h.b16 %v344
    %v656 = vunpack.c.l.b16 %v345
    %v657 = vunpack.c.l.b16 %v346
    %v658 = vunpack.c.h.b16 %v346
    %v659 = vunpack.c.l.b16 %v347
    %v660 = vunpack.c.l.b16 %v348
    %v661 = vunpack.c.h.b16 %v348
    %v662 = vunpack.c.l.b16 %v349
    %v663 = vunpack.c.l.b16 %v350
    %v664 = vunpack.c.h.b16 %v350
    %v665 = vunpack.c.l.b16 %v351
    %v666 = vunpack.c.l.b16 %v352
    %v667 = vunpack.c.h.b16 %v352
    %v668 = vunpack.c.l.b16 %v353
    %v669 = vunpack.c.l.b16 %v354
    %v670 = vunpack.c.h.b16 %v354
    %v671 = vunpack.c.l.b16 %v355
    %v672 = vunpack.c.l.b16 %v356
    %v673 = vunpack.c.h.b16 %v356
    %v674 = vunpack.c.l.b16 %v357
    %v675 = vunpack.c.l.b16 %v358
    %v676 = vunpack.c.h.b16 %v358
    %v677 = vunpack.c.l.b16 %v359
    %v678 = vunpack.c.l.b16 %v360
    %v679 = vunpack.c.h.b16 %v360
    %v680 = vunpack.c.l.b16 %v361
    %v681 = vunpack.c.l.b16 %v362
    %v682 = vunpack.c.h.b16 %v362
    %v683 = vunpack.c.l.b16 %v363
    %v684 = vunpack.c.l.b16 %v364
    %v685 = vunpack.c.h.b16 %v364
    %v686 = vunpack.c.l.b16 %v365
    %v687 = vunpack.c.l.b16 %v366
    %v688 = vunpack.c.h.b16 %v366
    %v689 = vunpack.c.l.b16 %v367
    %v690 = vunpack.c.l.b16 %v368
    %v691 = vunpack.c.h.b16 %v368
    %v692 = vunpack.c.l.b16 %v369
    %v693 = vunpack.c.l.b16 %v370
    %v694 = vunpack.c.h.b16 %v370
    %v695 = vunpack.c.l.b16 %v371
    %v696 = vunpack.c.l.b16 %v372
    %v697 = vunpack.c.h.b16 %v372
    %v698 = vunpack.c.l.b16 %v373
    %v699 = vunpack.c.l.b16 %v374
    %v700 = vunpack.c.h.b16 %v374
    %v701 = vunpack.c.l.b16 %v375
    %v702 = vunpack.c.l.b16 %v376
    %v703 = vunpack.c.h.b16 %v376
    %v704 = vunpack.c.l.b16 %v377
    %v705 = vunpack.c.l.b16 %v378
    %v706 = vunpack.c.h.b16 %v378
    %v707 = vunpack.c.l.b16 %v379
    %v708 = vunpack.c.l.b16 %v380
    %v709 = vunpack.c.h.b16 %v380
    %v710 = vunpack.c.l.b16 %v381
    %v711 = vunpack.c.l.b16 %v382
    %v712 = vunpack.c.h.b16 %v382
    %v713 = vunpack.c.l.b16 %v383
    %v714 = vunpack.c.l.b16 %v384
    %v715 = vunpack.c.h.b16 %v384
    %v716 = vunpack.c.l.b16 %v385
    %v717 = vunpack.c.l.b16 %v386
    %v718 = vunpack.c.h.b16 %v386
    %v719 = vunpack.c.l.b16 %v387
    %v720 = vunpack.c.l.b16 %v388
    %v721 = vunpack.c.h.b16 %v388
    %v722 = vunpack.c.l.b16 %v389
    %v723 = vunpack.c.l.b16 %v390
    %v724 = vunpack.c.h.b16 %v390
    %v725 = vunpack.c.l.b16 %v391
    %v726 = vunpack.c.l.b16 %v392
    %v727 = vunpack.c.h.b16 %v392
    %v728 = vunpack.c.l.b16 %v393
    %v729 = vunpack.c.l.b16 %v394
    %v730 = vunpack.c.h.b16 %v394
    %v731 = vunpack.c.l.b16 %v395
    %v732 = vunpack.c.l.b16 %v396
    %v733 = vunpack.c.h.b16 %v396
    %v734 = vunpack.c.l.b16 %v397
    %v735 = vpack.c.b16 %v546, %v543
    %v736 = vpack.c.b16 %v547, %v544
    %v737 = vpack.c.b16 %v548, %v545
    %v738 = vpack.c.b16 %v552, %v549
    %v739 = vpack.c.b16 %v553, %v550
    %v740 = vpack.c.b16 %v554, %v551
    %v741 = vpack.c.b16 %v558, %v555
    %v742 = vpack.c.b16 %v559, %v556
    %v743 = vpack.c.b16 %v560, %v557
    %v744 = vpack.c.b16 %v564, %v561
    %v745 = vpack.c.b16 %v565, %v562
    %v746 = vpack.c.b16 %v566, %v563
    %v747 = vpack.c.b16 %v570, %v567
    %v748 = vpack.c.b16 %v571, %v568
    %v749 = vpack.c.b16 %v572, %v569
    %v750 = vpack.c.b16 %v576, %v573
    %v751 = vpack.c.b16 %v577, %v574
    %v752 = vpack.c.b16 %v578, %v575
    %v753 = vpack.c.b16 %v582, %v579
    %v754 = vpack.c.b16 %v583, %v580
    %v755 = vpack.c.b16 %v584, %v581
    %v756 = vpack.c.b16 %v588, %v585
    %v757 = vpack.c.b16 %v589, %v586
    %v758 = vpack.c.b16 %v590, %v587
    %v759 = vpack.c.b16 %v594, %v591
    %v760 = vpack.c.b16 %v595, %v592
    %v761 = vpack.c.b16 %v596, %v593
    %v762 = vpack.c.b16 %v600, %v597
    %v763 = vpack.c.b16 %v601, %v598
    %v764 = vpack.c.b16 %v602, %v599
    %v765 = vpack.c.b16 %v606, %v603
    %v766 = vpack.c.b16 %v607, %v604
    %v767 = vpack.c.b16 %v608, %v605
    %v768 = vpack.c.b16 %v612, %v609
    %v769 = vpack.c.b16 %v613, %v610
    %v770 = vpack.c.b16 %v614, %v611
    %v771 = vpack.c.b16 %v618, %v615
    %v772 = vpack.c.b16 %v619, %v616
    %v773 = vpack.c.b16 %v620, %v617
    %v774 = vpack.c.b16 %v624, %v621
    %v775 = vpack.c.b16 %v625, %v622
    %v776 = vpack.c.b16 %v626, %v623
    %v777 = vpack.c.b16 %v630, %v627
    %v778 = vpack.c.b16 %v631, %v628
    %v779 = vpack.c.b16 %v632, %v629
    %v780 = vpack.c.b16 %v636, %v633
    %v781 = vpack.c.b16 %v637, %v634
    %v782 = vpack.c.b16 %v638, %v635
    %v783 = vpack.c.b16 %v642, %v639
    %v784 = vpack.c.b16 %v643, %v640
    %v785 = vpack.c.b16 %v644, %v641
    %v786 = vpack.c.b16 %v648, %v645
    %v787 = vpack.c.b16 %v649, %v646
    %v788 = vpack.c.b16 %v650, %v647
    %v789 = vpack.c.b16 %v654, %v651
    %v790 = vpack.c.b16 %v655, %v652
    %v791 = vpack.c.b16 %v656, %v653
    %v792 = vpack.c.b16 %v660, %v657
    %v793 = vpack.c.b16 %v661, %v658
    %v794 = vpack.c.b16 %v662, %v659
    %v795 = vpack.c.b16 %v666, %v663
    %v796 = vpack.c.b16 %v667, %v664
    %v797 = vpack.c.b16 %v668, %v665
    %v798 = vpack.c.b16 %v672, %v669
    %v799 = vpack.c.b16 %v673, %v670
    %v800 = vpack.c.b16 %v674, %v671
    %v801 = vpack.c.b16 %v678, %v675
    %v802 = vpack.c.b16 %v679, %v676
    %v803 = vpack.c.b16 %v680, %v677
    %v804 = vpack.c.b16 %v684, %v681
    %v805 = vpack.c.b16 %v685, %v682
    %v806 = vpack.c.b16 %v686, %v683
    %v807 = vpack.c.b16 %v690, %v687
    %v808 = vpack.c.b16 %v691, %v688
    %v809 = vpack.c.b16 %v692, %v689
    %v810 = vpack.c.b16 %v696, %v693
    %v811 = vpack.c.b16 %v697, %v694
    %v812 = vpack.c.b16 %v698, %v695
    %v813 = vpack.c.b16 %v702, %v699
    %v814 = vpack.c.b16 %v703, %v700
    %v815 = vpack.c.b16 %v704, %v701
    %v816 = vpack.c.b16 %v708, %v705
    %v817 = vpack.c.b16 %v709, %v706
    %v818 = vpack.c.b16 %v710, %v707
    %v819 = vpack.c.b16 %v714, %v711
    %v820 = vpack.c.b16 %v715, %v712
    %v821 = vpack.c.b16 %v716, %v713
    %v822 = vpack.c.b16 %v720, %v717
    %v823 = vpack.c.b16 %v721, %v718
    %v824 = vpack.c.b16 %v722, %v719
    %v825 = vpack.c.b16 %v726, %v723
    %v826 = vpack.c.b16 %v727, %v724
    %v827 = vpack.c.b16 %v728, %v725
    %v828 = vpack.c.b16 %v732, %v729
    %v829 = vpack.c.b16 %v733, %v730
    %v830 = vpack.c.b16 %v734, %v731
    %927 = vmatprep.subr.bf16.mxu0 %v736
    %928 = vmatpush1.bf16.msra.mxu0 %v735
    %929 = vmatprep.subr.bf16.mxu0 %v739
    %930 = vmatpush1.bf16.msra.mxu0 %v738
    %931 = vmatprep.subr.bf16.mxu0 %v742
    %932 = vmatpush1.bf16.msra.mxu0 %v741
    %933 = vmatprep.subr.bf16.mxu0 %v745
    %934 = vmatpush1.bf16.msra.mxu0 %v744
    %935 = vmatprep.subr.bf16.mxu0 %v748
    %936 = vmatpush1.bf16.msra.mxu0 %v747
    %937 = vmatprep.subr.bf16.mxu0 %v751
    %938 = vmatpush1.bf16.msra.mxu0 %v750
    %939 = vmatprep.subr.bf16.mxu0 %v754
    %940 = vmatpush1.bf16.msra.mxu0 %v753
    %941 = vmatprep.subr.bf16.mxu0 %v757
    %942 = vmatpush1.bf16.msra.mxu0 %v756
    %943 = vmatprep.subr.bf16.mxu0 %v760
    %944 = vmatpush1.bf16.msra.mxu0 %v759
    %945 = vmatprep.subr.bf16.mxu0 %v763
    %946 = vmatpush1.bf16.msra.mxu0 %v762
    %947 = vmatprep.subr.bf16.mxu0 %v766
    %948 = vmatpush1.bf16.msra.mxu0 %v765
    %949 = vmatprep.subr.bf16.mxu0 %v769
    %950 = vmatpush1.bf16.msra.mxu0 %v768
    %951 = vmatprep.subr.bf16.mxu0 %v772
    %952 = vmatpush1.bf16.msra.mxu0 %v771
    %953 = vmatprep.subr.bf16.mxu0 %v775
    %954 = vmatpush1.bf16.msra.mxu0 %v774
    %955 = vmatprep.subr.bf16.mxu0 %v778
    %956 = vmatpush1.bf16.msra.mxu0 %v777
    %957 = vmatprep.subr.bf16.mxu0 %v781
    %958 = vmatpush1.bf16.msra.mxu0 %v780
    %959 = vmatprep.mubr.bf16.mxu0 %v267
    %960 = vmatmul.mubr.bf16.gmra.mrb[0].mxu0 %v266
    %v961 = vpop.f32.mrb[0].mxu0
    %v962 = vadd.f32 %v403, %v961
    %v963 = vpop.f32.mrb[0].mxu0
    %v964 = vadd.f32 %v407, %v963
    %v965 = vpop.f32.mrb[0].mxu0
    %v966 = vadd.f32 %v403, %v965
    %v967 = vpop.f32.mrb[0].mxu0
    %v968 = vadd.f32 %v407, %v967
    %969 = vdwg.mxu0
    %970 = vmatprep.subr.bf16.mxu0 %v784
    %971 = vmatpush1.bf16.msra.mxu0 %v783
    %972 = vmatprep.subr.bf16.mxu0 %v787
    %973 = vmatpush1.bf16.msra.mxu0 %v786
    %974 = vmatprep.subr.bf16.mxu0 %v790
    %975 = vmatpush1.bf16.msra.mxu0 %v789
    %976 = vmatprep.subr.bf16.mxu0 %v793
    %977 = vmatpush1.bf16.msra.mxu0 %v792
    %978 = vmatprep.subr.bf16.mxu0 %v796
    %979 = vmatpush1.bf16.msra.mxu0 %v795
    %980 = vmatprep.subr.bf16.mxu0 %v799
    %981 = vmatpush1.bf16.msra.mxu0 %v798
    %982 = vmatprep.subr.bf16.mxu0 %v802
    %983 = vmatpush1.bf16.msra.mxu0 %v801
    %984 = vmatprep.subr.bf16.mxu0 %v805
    %985 = vmatpush1.bf16.msra.mxu0 %v804
    %986 = vmatprep.subr.bf16.mxu0 %v808
    %987 = vmatpush1.bf16.msra.mxu0 %v807
    %988 = vmatprep.subr.bf16.mxu0 %v811
    %989 = vmatpush1.bf16.msra.mxu0 %v810
    %990 = vmatprep.subr.bf16.mxu0 %v814
    %991 = vmatpush1.bf16.msra.mxu0 %v813
    %992 = vmatprep.subr.bf16.mxu0 %v817
    %993 = vmatpush1.bf16.msra.mxu0 %v816
    %994 = vmatprep.subr.bf16.mxu0 %v820
    %995 = vmatpush1.bf16.msra.mxu0 %v819
    %996 = vmatprep.subr.bf16.mxu0 %v823
    %997 = vmatpush1.bf16.msra.mxu0 %v822
    %998 = vmatprep.subr.bf16.mxu0 %v826
    %999 = vmatpush1.bf16.msra.mxu0 %v825
    %1000 = vmatprep.subr.bf16.mxu0 %v829
    %1001 = vmatpush1.bf16.msra.mxu0 %v828
    %1002 = vmatprep.mubr.bf16.mxu0 %v269
    %1003 = vmatmul.mubr.bf16.gmra.mrb[0].mxu0 %v268
    %v1004 = vpop.f32.mrb[0].mxu0
    %v1005 = vadd.f32 %v962, %v1004
    %v1006 = vpop.f32.mrb[0].mxu0
    %v1007 = vadd.f32 %v964, %v1006
    %v1008 = vpop.f32.mrb[0].mxu0
    %v1009 = vadd.f32 %v966, %v1008
    %v1010 = vpop.f32.mrb[0].mxu0
    %v1011 = vadd.f32 %v968, %v1010
    %1012 = vdwg.mxu0
    %1013 = vmatprep.subr.bf16.mxu0 0
    %1014 = vmatpush1.bf16.msra.mxu0 %v737
    %1015 = vmatprep.subr.bf16.mxu0 0
    %1016 = vmatpush1.bf16.msra.mxu0 %v740
    %1017 = vmatprep.subr.bf16.mxu0 0
    %1018 = vmatpush1.bf16.msra.mxu0 %v743
    %1019 = vmatprep.subr.bf16.mxu0 0
    %1020 = vmatpush1.bf16.msra.mxu0 %v746
    %1021 = vmatprep.subr.bf16.mxu0 0
    %1022 = vmatpush1.bf16.msra.mxu0 %v749
    %1023 = vmatprep.subr.bf16.mxu0 0
    %1024 = vmatpush1.bf16.msra.mxu0 %v752
    %1025 = vmatprep.subr.bf16.mxu0 0
    %1026 = vmatpush1.bf16.msra.mxu0 %v755
    %1027 = vmatprep.subr.bf16.mxu0 0
    %1028 = vmatpush1.bf16.msra.mxu0 %v758
    %1029 = vmatprep.subr.bf16.mxu0 0
    %1030 = vmatpush1.bf16.msra.mxu0 %v761
    %1031 = vmatprep.subr.bf16.mxu0 0
    %1032 = vmatpush1.bf16.msra.mxu0 %v764
    %1033 = vmatprep.subr.bf16.mxu0 0
    %1034 = vmatpush1.bf16.msra.mxu0 %v767
    %1035 = vmatprep.subr.bf16.mxu0 0
    %1036 = vmatpush1.bf16.msra.mxu0 %v770
    %1037 = vmatprep.subr.bf16.mxu0 0
    %1038 = vmatpush1.bf16.msra.mxu0 %v773
    %1039 = vmatprep.subr.bf16.mxu0 0
    %1040 = vmatpush1.bf16.msra.mxu0 %v776
    %1041 = vmatprep.subr.bf16.mxu0 0
    %1042 = vmatpush1.bf16.msra.mxu0 %v779
    %1043 = vmatprep.subr.bf16.mxu0 0
    %1044 = vmatpush1.bf16.msra.mxu0 %v782
    %1045 = vmatprep.mubr.bf16.mxu0 %v267
    %1046 = vmatmul.mubr.bf16.gmra.mrb[0].mxu0 %v266
    %v1047 = vpop.f32.mrb[0].mxu0
    %v1048 = vadd.f32 %v411, %v1047
    %v1049 = vpop.f32.mrb[0].mxu0
    %v1050 = vpop.f32.mrb[0].mxu0
    %v1051 = vadd.f32 %v411, %v1050
    %v1052 = vpop.f32.mrb[0].mxu0
    %1053 = vdwg.mxu0
    %1054 = vmatprep.subr.bf16.mxu0 0
    %1055 = vmatpush1.bf16.msra.mxu0 %v785
    %1056 = vmatprep.subr.bf16.mxu0 0
    %1057 = vmatpush1.bf16.msra.mxu0 %v788
    %1058 = vmatprep.subr.bf16.mxu0 0
    %1059 = vmatpush1.bf16.msra.mxu0 %v791
    %1060 = vmatprep.subr.bf16.mxu0 0
    %1061 = vmatpush1.bf16.msra.mxu0 %v794
    %1062 = vmatprep.subr.bf16.mxu0 0
    %1063 = vmatpush1.bf16.msra.mxu0 %v797
    %1064 = vmatprep.subr.bf16.mxu0 0
    %1065 = vmatpush1.bf16.msra.mxu0 %v800
    %1066 = vmatprep.subr.bf16.mxu0 0
    %1067 = vmatpush1.bf16.msra.mxu0 %v803
    %1068 = vmatprep.subr.bf16.mxu0 0
    %1069 = vmatpush1.bf16.msra.mxu0 %v806
    %1070 = vmatprep.subr.bf16.mxu0 0
    %1071 = vmatpush1.bf16.msra.mxu0 %v809
    %1072 = vmatprep.subr.bf16.mxu0 0
    %1073 = vmatpush1.bf16.msra.mxu0 %v812
    %1074 = vmatprep.subr.bf16.mxu0 0
    %1075 = vmatpush1.bf16.msra.mxu0 %v815
    %1076 = vmatprep.subr.bf16.mxu0 0
    %1077 = vmatpush1.bf16.msra.mxu0 %v818
    %1078 = vmatprep.subr.bf16.mxu0 0
    %1079 = vmatpush1.bf16.msra.mxu0 %v821
    %1080 = vmatprep.subr.bf16.mxu0 0
    %1081 = vmatpush1.bf16.msra.mxu0 %v824
    %1082 = vmatprep.subr.bf16.mxu0 0
    %1083 = vmatpush1.bf16.msra.mxu0 %v827
    %1084 = vmatprep.subr.bf16.mxu0 0
    %1085 = vmatpush1.bf16.msra.mxu0 %v830
    %1086 = vmatprep.mubr.bf16.mxu0 %v269
    %1087 = vmatmul.mubr.bf16.gmra.mrb[0].mxu0 %v268
    %v1088 = vpop.f32.mrb[0].mxu0
    %v1089 = vadd.f32 %v1048, %v1088
    %v1090 = vpop.f32.mrb[0].mxu0
    %v1091 = vpop.f32.mrb[0].mxu0
    %v1092 = vadd.f32 %v1051, %v1091
    %v1093 = vpop.f32.mrb[0].mxu0
    %1094 = vdwg.mxu0
    %v1095 = vmax.f32 %v1005, 0.0
    %v1096 = vmax.f32 %v1007, 0.0
    %v1097 = vmax.f32 %v1089, 0.0
    %v1098 = vmax.f32 %v1009, 0.0
    %v1099 = vmax.f32 %v1011, 0.0
    %v1100 = vmax.f32 %v1092, 0.0
    %v1101 = vpack.c.bf16 %v1098, %v1095
    %v1102 = vpack.c.bf16 %v1099, %v1096
    %v1103 = vpack.c.bf16 %v1100, %v1097
    %v1104 = vld [vmem:[#allocation11] sm:$0xf]
    %v1105 = vld [vmem:[#allocation11 + $0x4] sm:$0xf]
    %v1106 = vld [vmem:[#allocation11 + $0x8] sm:$0xf]
    %v1107 = vld [vmem:[#allocation11 + $0xc] sm:$0xf]
    %v1108 = vld [vmem:[#allocation11 + $0x10] sm:$0xf]
    %v1109 = vld [vmem:[#allocation11 + $0x14] sm:$0xf]
    %v1110 = vld [vmem:[#allocation11 + $0x18] sm:$0xf]
    %v1111 = vld [vmem:[#allocation11 + $0x1c] sm:$0xf]
    %v1112 = vld [vmem:[#allocation11 + $0x20] sm:$0xf]
    %v1113 = vld [vmem:[#allocation11 + $0x24] sm:$0xf]
    %v1114 = vld [vmem:[#allocation11 + $0x28] sm:$0xf]
    %v1115 = vld [vmem:[#allocation11 + $0x2c] sm:$0xf]
    %v1116 = vld [vmem:[#allocation11 + $0x30] sm:$0xf]
    %v1117 = vld [vmem:[#allocation11 + $0x34] sm:$0xf]
    %v1118 = vld [vmem:[#allocation11 + $0x38] sm:$0xf]
    %v1119 = vld [vmem:[#allocation11 + $0x3c] sm:$0xf]
    %v1120 = vld [vmem:[#allocation11 + $0x40] sm:$0xf]
    %v1121 = vld [vmem:[#allocation11 + $0x44] sm:$0xf]
    %v1122 = vld [vmem:[#allocation11 + $0x48] sm:$0xf]
    %v1123 = vld [vmem:[#allocation11 + $0x4c] sm:$0xf]
    %v1124 = vld [vmem:[#allocation11 + $0x50] sm:$0xf]
    %v1125 = vld [vmem:[#allocation11 + $0x54] sm:$0xf]
    %v1126 = vld [vmem:[#allocation11 + $0x58] sm:$0xf]
    %v1127 = vld [vmem:[#allocation11 + $0x5c] sm:$0xf]
    %v1128 = vld [vmem:[#allocation11 + $0x60] sm:$0xf]
    %v1129 = vld [vmem:[#allocation11 + $0x64] sm:$0xf]
    %v1130 = vld [vmem:[#allocation11 + $0x68] sm:$0xf]
    %v1131 = vld [vmem:[#allocation11 + $0x6c] sm:$0xf]
    %v1132 = vld [vmem:[#allocation11 + $0x70] sm:$0xf]
    %v1133 = vld [vmem:[#allocation11 + $0x74] sm:$0xf]
    %v1134 = vld [vmem:[#allocation11 + $0x78] sm:$0xf]
    %v1135 = vld [vmem:[#allocation11 + $0x7c] sm:$0xf]
    %v1136 = vld [vmem:[#allocation11 + $0x80] sm:$0xf]
    %v1137 = vld [vmem:[#allocation11 + $0x84] sm:$0xf]
    %v1138 = vld [vmem:[#allocation11 + $0x88] sm:$0xf]
    %v1139 = vld [vmem:[#allocation11 + $0x8c] sm:$0xf]
    %v1140 = vld [vmem:[#allocation11 + $0x90] sm:$0xf]
    %v1141 = vld [vmem:[#allocation11 + $0x94] sm:$0xf]
    %v1142 = vld [vmem:[#allocation11 + $0x98] sm:$0xf]
    %v1143 = vld [vmem:[#allocation11 + $0x9c] sm:$0xf]
    %v1144 = vld [vmem:[#allocation11 + $0xa0] sm:$0xf]
    %v1145 = vld [vmem:[#allocation11 + $0xa4] sm:$0xf]
    %v1146 = vld [vmem:[#allocation11 + $0xa8] sm:$0xf]
    %v1147 = vld [vmem:[#allocation11 + $0xac] sm:$0xf]
    %v1148 = vld [vmem:[#allocation11 + $0xb0] sm:$0xf]
    %v1149 = vld [vmem:[#allocation11 + $0xb4] sm:$0xf]
    %v1150 = vld [vmem:[#allocation11 + $0xb8] sm:$0xf]
    %v1151 = vld [vmem:[#allocation11 + $0xbc] sm:$0xf]
    %v1152 = vld [vmem:[%s7] sm:$0x1]
    %v1154 = vlaneseq
    %v1155 = vshrl.u32 %v1154, 7
    %v1156 = vsub.s32 0, %v1155
    %v1157 = vrot.slane %v1152, %v1156
    %v1207 = vunpack.c.l.b16 %v1104
    %v1208 = vunpack.c.l.b16 %v1105
    %v1209 = vunpack.c.l.b16 %v1106
    %v1210 = vunpack.c.l.b16 %v1107
    %v1211 = vunpack.c.l.b16 %v1108
    %v1212 = vunpack.c.l.b16 %v1109
    %v1213 = vunpack.c.l.b16 %v1110
    %v1214 = vunpack.c.l.b16 %v1111
    %v1215 = vunpack.c.l.b16 %v1112
    %v1216 = vunpack.c.l.b16 %v1113
    %v1217 = vunpack.c.l.b16 %v1114
    %v1218 = vunpack.c.l.b16 %v1115
    %v1219 = vunpack.c.l.b16 %v1116
    %v1220 = vunpack.c.l.b16 %v1117
    %v1221 = vunpack.c.l.b16 %v1118
    %v1222 = vunpack.c.l.b16 %v1119
    %v1223 = vunpack.c.l.b16 %v1120
    %v1224 = vunpack.c.l.b16 %v1121
    %v1225 = vunpack.c.l.b16 %v1122
    %v1226 = vunpack.c.l.b16 %v1123
    %v1227 = vunpack.c.l.b16 %v1124
    %v1228 = vunpack.c.l.b16 %v1125
    %v1229 = vunpack.c.l.b16 %v1126
    %v1230 = vunpack.c.l.b16 %v1127
    %v1231 = vunpack.c.l.b16 %v1128
    %v1232 = vunpack.c.l.b16 %v1129
    %v1233 = vunpack.c.l.b16 %v1130
    %v1234 = vunpack.c.l.b16 %v1131
    %v1235 = vunpack.c.l.b16 %v1132
    %v1236 = vunpack.c.l.b16 %v1133
    %v1237 = vunpack.c.l.b16 %v1134
    %v1238 = vunpack.c.l.b16 %v1135
    %v1239 = vunpack.c.l.b16 %v1136
    %v1240 = vunpack.c.l.b16 %v1137
    %v1241 = vunpack.c.l.b16 %v1138
    %v1242 = vunpack.c.l.b16 %v1139
    %v1243 = vunpack.c.l.b16 %v1140
    %v1244 = vunpack.c.l.b16 %v1141
    %v1245 = vunpack.c.l.b16 %v1142
    %v1246 = vunpack.c.l.b16 %v1143
    %v1247 = vunpack.c.l.b16 %v1144
    %v1248 = vunpack.c.l.b16 %v1145
    %v1249 = vunpack.c.l.b16 %v1146
    %v1250 = vunpack.c.l.b16 %v1147
    %v1251 = vunpack.c.l.b16 %v1148
    %v1252 = vunpack.c.l.b16 %v1149
    %v1253 = vunpack.c.l.b16 %v1150
    %v1254 = vunpack.c.l.b16 %v1151
    %v1255 = vpack.c.b16 %v1208, %v1207
    %v1256 = vpack.c.b16 %v1210, %v1209
    %v1257 = vpack.c.b16 %v1212, %v1211
    %v1258 = vpack.c.b16 %v1214, %v1213
    %v1259 = vpack.c.b16 %v1216, %v1215
    %v1260 = vpack.c.b16 %v1218, %v1217
    %v1261 = vpack.c.b16 %v1220, %v1219
    %v1262 = vpack.c.b16 %v1222, %v1221
    %v1263 = vpack.c.b16 %v1224, %v1223
    %v1264 = vpack.c.b16 %v1226, %v1225
    %v1265 = vpack.c.b16 %v1228, %v1227
    %v1266 = vpack.c.b16 %v1230, %v1229
    %v1267 = vpack.c.b16 %v1232, %v1231
    %v1268 = vpack.c.b16 %v1234, %v1233
    %v1269 = vpack.c.b16 %v1236, %v1235
    %v1270 = vpack.c.b16 %v1238, %v1237
    %v1271 = vpack.c.b16 %v1240, %v1239
    %v1272 = vpack.c.b16 %v1242, %v1241
    %v1273 = vpack.c.b16 %v1244, %v1243
    %v1274 = vpack.c.b16 %v1246, %v1245
    %v1275 = vpack.c.b16 %v1248, %v1247
    %v1276 = vpack.c.b16 %v1250, %v1249
    %v1277 = vpack.c.b16 %v1252, %v1251
    %v1278 = vpack.c.b16 %v1254, %v1253
    %1303 = vmatprep.subr.bf16.mxu0 0
    %1304 = vmatpush1.bf16.msra.mxu0 %v1255
    %1305 = vmatprep.subr.bf16.mxu0 0
    %1306 = vmatpush1.bf16.msra.mxu0 %v1256
    %1307 = vmatprep.subr.bf16.mxu0 0
    %1308 = vmatpush1.bf16.msra.mxu0 %v1257
    %1309 = vmatprep.subr.bf16.mxu0 0
    %1310 = vmatpush1.bf16.msra.mxu0 %v1258
    %1311 = vmatprep.subr.bf16.mxu0 0
    %1312 = vmatpush1.bf16.msra.mxu0 %v1259
    %1313 = vmatprep.subr.bf16.mxu0 0
    %1314 = vmatpush1.bf16.msra.mxu0 %v1260
    %1315 = vmatprep.subr.bf16.mxu0 0
    %1316 = vmatpush1.bf16.msra.mxu0 %v1261
    %1317 = vmatprep.subr.bf16.mxu0 0
    %1318 = vmatpush1.bf16.msra.mxu0 %v1262
    %1319 = vmatprep.subr.bf16.mxu0 0
    %1320 = vmatpush1.bf16.msra.mxu0 %v1263
    %1321 = vmatprep.subr.bf16.mxu0 0
    %1322 = vmatpush1.bf16.msra.mxu0 %v1264
    %1323 = vmatprep.subr.bf16.mxu0 0
    %1324 = vmatpush1.bf16.msra.mxu0 %v1265
    %1325 = vmatprep.subr.bf16.mxu0 0
    %1326 = vmatpush1.bf16.msra.mxu0 %v1266
    %1327 = vmatprep.subr.bf16.mxu0 0
    %1328 = vmatpush1.bf16.msra.mxu0 %v1267
    %1329 = vmatprep.subr.bf16.mxu0 0
    %1330 = vmatpush1.bf16.msra.mxu0 %v1268
    %1331 = vmatprep.subr.bf16.mxu0 0
    %1332 = vmatpush1.bf16.msra.mxu0 %v1269
    %1333 = vmatprep.subr.bf16.mxu0 0
    %1334 = vmatpush1.bf16.msra.mxu0 %v1270
    %1335 = vmatprep.mubr.bf16.mxu0 %v1102
    %1336 = vmatmul.mubr.bf16.gmra.mrb[0].mxu0 %v1101
    %v1337 = vpop.f32.mrb[0].mxu0
    %v1338 = vadd.f32 %v1157, %v1337
    %v1339 = vpop.f32.mrb[0].mxu0
    %v1340 = vpop.f32.mrb[0].mxu0
    %v1341 = vadd.f32 %v1157, %v1340
    %v1342 = vpop.f32.mrb[0].mxu0
    %1343 = vdwg.mxu0
    %1344 = vmatprep.subr.bf16.mxu0 0
    %1345 = vmatpush1.bf16.msra.mxu0 %v1271
    %1346 = vmatprep.subr.bf16.mxu0 0
    %1347 = vmatpush1.bf16.msra.mxu0 %v1272
    %1348 = vmatprep.subr.bf16.mxu0 0
    %1349 = vmatpush1.bf16.msra.mxu0 %v1273
    %1350 = vmatprep.subr.bf16.mxu0 0
    %1351 = vmatpush1.bf16.msra.mxu0 %v1274
    %1352 = vmatprep.subr.bf16.mxu0 0
    %1353 = vmatpush1.bf16.msra.mxu0 %v1275
    %1354 = vmatprep.subr.bf16.mxu0 0
    %1355 = vmatpush1.bf16.msra.mxu0 %v1276
    %1356 = vmatprep.subr.bf16.mxu0 0
    %1357 = vmatpush1.bf16.msra.mxu0 %v1277
    %1358 = vmatprep.subr.bf16.mxu0 0
    %1359 = vmatpush1.bf16.msra.mxu0 %v1278
    %1360 = vmatprep.subr.bf16.mxu0 0
    %1361 = vmatpush1.bf16.msra.mxu0 0
    %1362 = vmatprep.subr.bf16.mxu0 0
    %1363 = vmatpush1.bf16.msra.mxu0 0
    %1364 = vmatprep.subr.bf16.mxu0 0
    %1365 = vmatpush1.bf16.msra.mxu0 0
    %1366 = vmatprep.subr.bf16.mxu0 0
    %1367 = vmatpush1.bf16.msra.mxu0 0
    %1368 = vmatprep.subr.bf16.mxu0 0
    %1369 = vmatpush1.bf16.msra.mxu0 0
    %1370 = vmatprep.subr.bf16.mxu0 0
    %1371 = vmatpush1.bf16.msra.mxu0 0
    %1372 = vmatprep.subr.bf16.mxu0 0
    %1373 = vmatpush1.bf16.msra.mxu0 0
    %1374 = vmatprep.subr.bf16.mxu0 0
    %1375 = vmatpush1.bf16.msra.mxu0 0
    %1376 = vmatprep.mubr.bf16.mxu0 0
    %1377 = vmatmul.mubr.bf16.gmra.mrb[0].mxu0 %v1103
    %v1378 = vpop.f32.mrb[0].mxu0
    %v1379 = vadd.f32 %v1338, %v1378
    %v1380 = vpop.f32.mrb[0].mxu0
    %v1381 = vpop.f32.mrb[0].mxu0
    %v1382 = vadd.f32 %v1341, %v1381
    %v1383 = vpop.f32.mrb[0].mxu0
    %1384 = vdwg.mxu0
    %v1385 = vxor.u32 %v1379, 2147483648
    %v1386 = vxor.u32 %v1382, 2147483648
    %v1387 = vmul.f32 %v1385, 1.442695
    %v1388 = vpow.pop %v1387
    %v1389 = vmul.f32 %v1386, 1.442695
    %v1390 = vpow.pop %v1389
    %v1391 = vadd.f32 %v1388, 1.0
    %v1392 = vadd.f32 %v1390, 1.0
    %v1393 = vrcp.pop %v1391
    %v1394 = vmul.f32 1.0, %v1393
    %v1395 = vrcp.pop %v1392
    %v1396 = vmul.f32 1.0, %v1395
    %v1397 = vpack.c.bf16 %v1396, %v1394
    %v1398 = vld [vmem:[#allocation13] sm:$0xf]
    %v1399 = vld [vmem:[#allocation13 + $0x4] sm:$0xf]
    %v1400 = vld [vmem:[#allocation13 + $0x8] sm:$0xf]
    %v1401 = vld [vmem:[#allocation13 + $0xc] sm:$0xf]
    %v1402 = vld [vmem:[#allocation13 + $0x10] sm:$0xf]
    %v1403 = vld [vmem:[#allocation13 + $0x14] sm:$0xf]
    %v1404 = vld [vmem:[#allocation13 + $0x18] sm:$0xf]
    %v1405 = vld [vmem:[#allocation13 + $0x1c] sm:$0xf]
    %v1406 = vld [vmem:[#allocation13 + $0x20] sm:$0xf]
    %v1407 = vld [vmem:[#allocation13 + $0x24] sm:$0xf]
    %v1408 = vld [vmem:[#allocation13 + $0x28] sm:$0xf]
    %v1409 = vld [vmem:[#allocation13 + $0x2c] sm:$0xf]
    %v1410 = vld [vmem:[#allocation13 + $0x30] sm:$0xf]
    %v1411 = vld [vmem:[#allocation13 + $0x34] sm:$0xf]
    %v1412 = vld [vmem:[#allocation13 + $0x38] sm:$0xf]
    %v1413 = vld [vmem:[#allocation13 + $0x3c] sm:$0xf]
    %v1414 = vld [vmem:[%s9] sm:$0x1]
    %v1416 = vlaneseq
    %v1417 = vshrl.u32 %v1416, 7
    %v1418 = vsub.s32 0, %v1417
    %v1419 = vrot.slane %v1414, %v1418
    %v1437 = vunpack.c.l.b16 %v1398
    %v1438 = vunpack.c.l.b16 %v1399
    %v1439 = vunpack.c.l.b16 %v1400
    %v1440 = vunpack.c.l.b16 %v1401
    %v1441 = vunpack.c.l.b16 %v1402
    %v1442 = vunpack.c.l.b16 %v1403
    %v1443 = vunpack.c.l.b16 %v1404
    %v1444 = vunpack.c.l.b16 %v1405
    %v1445 = vunpack.c.l.b16 %v1406
    %v1446 = vunpack.c.l.b16 %v1407
    %v1447 = vunpack.c.l.b16 %v1408
    %v1448 = vunpack.c.l.b16 %v1409
    %v1449 = vunpack.c.l.b16 %v1410
    %v1450 = vunpack.c.l.b16 %v1411
    %v1451 = vunpack.c.l.b16 %v1412
    %v1452 = vunpack.c.l.b16 %v1413
    %v1453 = vpack.c.b16 %v1438, %v1437
    %v1454 = vpack.c.b16 %v1440, %v1439
    %v1455 = vpack.c.b16 %v1442, %v1441
    %v1456 = vpack.c.b16 %v1444, %v1443
    %v1457 = vpack.c.b16 %v1446, %v1445
    %v1458 = vpack.c.b16 %v1448, %v1447
    %v1459 = vpack.c.b16 %v1450, %v1449
    %v1460 = vpack.c.b16 %v1452, %v1451
    %1469 = vmatprep.subr.bf16.mxu0 0
    %1470 = vmatpush1.bf16.msra.mxu0 %v1453
    %1471 = vmatprep.subr.bf16.mxu0 0
    %1472 = vmatpush1.bf16.msra.mxu0 %v1454
    %1473 = vmatprep.subr.bf16.mxu0 0
    %1474 = vmatpush1.bf16.msra.mxu0 %v1455
    %1475 = vmatprep.subr.bf16.mxu0 0
    %1476 = vmatpush1.bf16.msra.mxu0 %v1456
    %1477 = vmatprep.subr.bf16.mxu0 0
    %1478 = vmatpush1.bf16.msra.mxu0 %v1457
    %1479 = vmatprep.subr.bf16.mxu0 0
    %1480 = vmatpush1.bf16.msra.mxu0 %v1458
    %1481 = vmatprep.subr.bf16.mxu0 0
    %1482 = vmatpush1.bf16.msra.mxu0 %v1459
    %1483 = vmatprep.subr.bf16.mxu0 0
    %1484 = vmatpush1.bf16.msra.mxu0 %v1460
    %1485 = vmatprep.subr.bf16.mxu0 0
    %1486 = vmatpush1.bf16.msra.mxu0 0
    %1487 = vmatprep.subr.bf16.mxu0 0
    %1488 = vmatpush1.bf16.msra.mxu0 0
    %1489 = vmatprep.subr.bf16.mxu0 0
    %1490 = vmatpush1.bf16.msra.mxu0 0
    %1491 = vmatprep.subr.bf16.mxu0 0
    %1492 = vmatpush1.bf16.msra.mxu0 0
    %1493 = vmatprep.subr.bf16.mxu0 0
    %1494 = vmatpush1.bf16.msra.mxu0 0
    %1495 = vmatprep.subr.bf16.mxu0 0
    %1496 = vmatpush1.bf16.msra.mxu0 0
    %1497 = vmatprep.subr.bf16.mxu0 0
    %1498 = vmatpush1.bf16.msra.mxu0 0
    %1499 = vmatprep.subr.bf16.mxu0 0
    %1500 = vmatpush1.bf16.msra.mxu0 0
    %1501 = vmatprep.mubr.bf16.mxu0 0
    %1502 = vmatmul.mubr.bf16.gmra.mrb[0].mxu0 %v1397
    %v1503 = vpop.f32.mrb[0].mxu0
    %v1504 = vadd.f32 %v1419, %v1503
    %v1505 = vpop.f32.mrb[0].mxu0
    %v1506 = vpop.f32.mrb[0].mxu0
    %v1507 = vadd.f32 %v1419, %v1506
    %v1508 = vpop.f32.mrb[0].mxu0
    %1509 = vdwg.mxu0
    %v1510 = vxor.u32 %v1504, 2147483648
    %v1511 = vxor.u32 %v1507, 2147483648
    %v1512 = vmul.f32 %v1510, 1.442695
    %v1513 = vpow.pop %v1512
    %v1514 = vmul.f32 %v1511, 1.442695
    %v1515 = vpow.pop %v1514
    %v1516 = vadd.f32 %v1513, 1.0
    %v1517 = vadd.f32 %v1515, 1.0
    %v1518 = vrcp.pop %v1516
    %v1519 = vmul.f32 1.0, %v1518
    %v1520 = vrcp.pop %v1517
    %v1521 = vmul.f32 1.0, %v1520
    %s1522 = sld [smem:[#allocation3]]
    %s1523 = sld [smem:[#allocation3 + $0x1]]
    %s1524 = ssub.f32 %s1523, %s1522
    %v1525 = vstv %s1524
    %v1526 = vmul.f32 %v1519, %v1525
    %v1527 = vmul.f32 %v1521, %v1525
    %v1528 = vstv %s1522
    %v1529 = vadd.f32 %v1526, %v1528
    %v1530 = vadd.f32 %v1527, %v1528
    %1531 = vst [vmem:[#allocation14] sm:$0xff] %v1529
    %1532 = vst [vmem:[#allocation14 + $0x8] sm:$0xff] %v1530
    // Predicated region
    $region66: #{tpu_custom_call.1} parent=1 // pred_check
      _
    $region67: #{tpu_custom_call.1} parent=1 // pred_check_branch
      %1534 = sbr.rel (0) target = $region69
    $region68: #{tpu_custom_call.1} parent=1 // pred_region
      %s1536 = ssub.s32 256, 256
      %1537 = vsyncadd [#allocation5], %s1536
      %s1538 = sshll.u32 [#allocation14], 4
      %s1539 = int_to_ptr.vmem [resolvable:$true] %s1538
      %1544 = dma.vmem_to_hbm [thread:$0]  %s1539, 256, %s10, [#allocation5], 128, 128, 8
    $region69: #{tpu_custom_call.1} parent=1 // pred_fallthru
      _
    // Predicated region
    $region70: #{tpu_custom_call.1} parent=1 // pred_check
      _
    $region71: #{tpu_custom_call.1} parent=1 // pred_check_branch
      %1546 = sbr.rel (0) target = $region73
    $region72: #{tpu_custom_call.1} parent=1 // pred_region
      %1547 = dma.done [#allocation5], 256
    $region73: #{tpu_custom_call.1} parent=1 // pred_fallthru
      _
    %1548 = vsyncpa [#allocation4], 1
    %1549 = vsyncpa [#allocation9], 1
    %1550 = vsyncpa [#allocation12], 1
    %1551 = vsyncpa [#allocation5], 1
    %1552 = vsyncpa [#allocation6], 1

</llo_original>
